<compile_context>
chip_gen: v7x
topology: tpu7x:2x2x1
jax: 0.10.0
libtpu: 0.0.40
codegen_flags: <defaults>
</compile_context>

<pallas_src>
import jax
import jax.numpy as jnp
from jax.experimental import pallas as pl
from jax.experimental.pallas import tpu as pltpu

LANE = 512                      # lane width of the 2-D slab (multiple of 128)
TARGET_BLOCK_BYTES = 4 << 20    # ~4 MiB blocks: near roofline on all generations
SMALL_BYTES = 1 << 20           # below this, plain XLA sigmoid wins
VMEM_LIMIT_BYTES = 64 << 20     # scoped-VMEM request; 4 x 4 MiB buffers fit easily


def _sigmoid_kernel(x_ref, o_ref):
    # Upcast to f32 so the transcendental runs at full precision everywhere
    # (v5e has no native bf16 VPU/EUP); cast back only at the store.
    x = x_ref[...].astype(jnp.float32)
    # Stable sigmoid: one EUP tanh + one VPU fma; avoids exp overflow corners.
    o_ref[...] = (0.5 * jnp.tanh(0.5 * x) + 0.5).astype(o_ref.dtype)


def _sigmoid_slab(x2d, rows, itemsize, sublane):
    """Run the Pallas kernel on a lane-dense (rows, LANE) slab."""
    dtype = x2d.dtype

    # Dtype-aware block rows targeting ~4 MiB, rounded to the sublane multiple.
    target_tr = max(
        sublane, (TARGET_BLOCK_BYTES // (LANE * itemsize)) // sublane * sublane
    )
    if rows >= 2 * sublane:
        # Guarantee >= 2 grid steps so both TensorCores are used on v7x.
        two_step_tr = ((rows + 1) // 2 + sublane - 1) // sublane * sublane
        tr = min(target_tr, two_step_tr)
    else:
        tr = rows
    grid = (pl.cdiv(rows, tr),)

    n = rows * LANE
    cost = pl.CostEstimate(
        flops=4 * n, transcendentals=n, bytes_accessed=2 * n * itemsize
    )

    return pl.pallas_call(
        _sigmoid_kernel,
        out_shape=jax.ShapeDtypeStruct((rows, LANE), dtype),
        grid=grid,
        in_specs=[pl.BlockSpec((tr, LANE), lambda i: (i, 0))],
        out_specs=pl.BlockSpec((tr, LANE), lambda i: (i, 0)),
        compiler_params=pltpu.CompilerParams(
            dimension_semantics=("parallel",),     # shard blocks across TCs on v7x
            vmem_limit_bytes=VMEM_LIMIT_BYTES,
        ),
        cost_estimate=cost,
    )(x2d)


def poet_forward(x: jax.Array, *, force_kernel: bool = False) -> jax.Array:
    """Elementwise sigmoid (Poet.forward) via a tiled, pipelined Pallas kernel."""
    orig_shape = x.shape
    dtype = x.dtype
    n = x.size
    itemsize = jnp.dtype(dtype).itemsize

    # f64 (or other exotic widths) has no TPU vector-unit support -> plain XLA.
    if itemsize not in (1, 2, 4):
        return jax.nn.sigmoid(x)

    # Small activations: launch / reshape overhead dominates; XLA fuses for free.
    if n * itemsize < SMALL_BYTES and not force_kernel:
        return jax.nn.sigmoid(x)

    sublane = {4: 8, 2: 16, 1: 32}[itemsize]
    pad_unit = LANE * sublane
    n_aligned = (n // pad_unit) * pad_unit
    if n_aligned == 0:
        return jax.nn.sigmoid(x)

    flat = x.reshape(-1)

    if n_aligned == n:
        # Fully aligned: no pad, no slice, no concat — one HBM pass each way.
        rows = n // LANE
        out = _sigmoid_slab(flat.reshape(rows, LANE), rows, itemsize, sublane)
        return out.reshape(orig_shape)

    # Ragged: kernel on the aligned prefix, plain sigmoid on the small tail,
    # instead of padding the whole array (avoids extra full HBM read+write).
    rows = n_aligned // LANE
    prefix = _sigmoid_slab(
        flat[:n_aligned].reshape(rows, LANE), rows, itemsize, sublane
    )
    tail = jax.nn.sigmoid(flat[n_aligned:])
    return jnp.concatenate([prefix.reshape(-1), tail]).reshape(orig_shape)


if __name__ == "__main__":
    key = jax.random.PRNGKey(0)
    k1, k2, k3 = jax.random.split(key, 3)

    # 1) Small NCHW input consistent with the module's usage (fallback path).
    x_small = jax.random.normal(k1, (2, 4, 16, 16), dtype=jnp.float32)
    y_small = jax.block_until_ready(poet_forward(x_small))
    assert y_small.shape == x_small.shape and y_small.dtype == x_small.dtype
    assert jnp.max(jnp.abs(y_small - jax.nn.sigmoid(x_small))) < 2e-6

    # 2) Larger aligned f32 tensor -> exercises the Pallas kernel path (2 blocks).
    x_big = jax.random.normal(k2, (4, 8, 128, 128), dtype=jnp.float32)
    y_big = jax.block_until_ready(poet_forward(x_big))
    assert y_big.shape == x_big.shape and y_big.dtype == x_big.dtype
    assert jnp.max(jnp.abs(y_big - jax.nn.sigmoid(x_big))) < 2e-6

    # 3) Ragged size -> kernel on the aligned prefix + XLA tail.
    x_rag = jax.random.normal(k3, (3, 5, 97, 129), dtype=jnp.float32)
    y_rag = jax.block_until_ready(poet_forward(x_rag, force_kernel=True))
    assert y_rag.shape == x_rag.shape
    assert jnp.max(jnp.abs(y_rag - jax.nn.sigmoid(x_rag))) < 2e-6

    # 4) bf16 path: in-kernel f32 upcast keeps accuracy.
    x_bf16 = x_big.astype(jnp.bfloat16)
    y_bf16 = jax.block_until_ready(poet_forward(x_bf16, force_kernel=True))
    ref_bf16 = jax.nn.sigmoid(x_bf16.astype(jnp.float32)).astype(jnp.bfloat16)
    assert y_bf16.dtype == jnp.bfloat16
    assert jnp.max(
        jnp.abs(y_bf16.astype(jnp.float32) - ref_bf16.astype(jnp.float32))
    ) < 1e-2

    print("KERNEL_OK")
</pallas_src>

<mosaic_0001>
module attributes {stable_mosaic.version = 11 : i64} {
  func.func @_sigmoid_kernel(%arg0: i32, %arg1: memref<512x512xf32, #tpu.memory_space<vmem>>, %arg2: memref<512x512xf32, #tpu.memory_space<vmem>>) attributes {dimension_semantics = [#tpu.dimension_semantics<parallel>], iteration_bounds = array<i64: 2>, scalar_prefetch = 0 : i64, scratch_operands = 0 : i64, tpu.core_type = #tpu.core_type<tc>, window_params = [{transform_indices = @transform_0, window_bounds = array<i64: 512, 512>}, {transform_indices = @transform_1, window_bounds = array<i64: 512, 512>}]} {
    %c0 = arith.constant 0 : index
    %c0_0 = arith.constant 0 : index
    %0 = vector.load %arg1[%c0, %c0_0] : memref<512x512xf32, #tpu.memory_space<vmem>>, vector<512x512xf32>
    %cst = arith.constant 5.000000e-01 : f32
    %1 = vector.broadcast %cst : f32 to vector<512x512xf32>
    %2 = arith.mulf %1, %0 : vector<512x512xf32>
    %3 = math.tanh %2 : vector<512x512xf32>
    %cst_1 = arith.constant 5.000000e-01 : f32
    %4 = vector.broadcast %cst_1 : f32 to vector<512x512xf32>
    %5 = arith.mulf %4, %3 : vector<512x512xf32>
    %cst_2 = arith.constant 5.000000e-01 : f32
    %6 = vector.broadcast %cst_2 : f32 to vector<512x512xf32>
    %7 = arith.addf %5, %6 : vector<512x512xf32>
    %c0_3 = arith.constant 0 : index
    %c0_4 = arith.constant 0 : index
    %8 = vector.load %arg2[%c0_3, %c0_4] : memref<512x512xf32, #tpu.memory_space<vmem>>, vector<512x512xf32>
    tpu.vector_store %arg2[%c0_3, %c0_4], %7 {strides = array<i32>} : memref<512x512xf32, #tpu.memory_space<vmem>>, vector<512x512xf32>,
    return
  }
  func.func @transform_0(%arg0: i32) -> (i32, i32) {
    %c0_i32 = arith.constant 0 : i32
    %c0_i32_0 = arith.constant 0 : i32
    return %arg0, %c0_i32 : i32, i32
  }
  func.func @transform_1(%arg0: i32) -> (i32, i32) {
    %c0_i32 = arith.constant 0 : i32
    %c0_i32_0 = arith.constant 0 : i32
    return %arg0, %c0_i32 : i32, i32
  }
}

</mosaic_0001>

<llo_original>
// kernel: tpu_custom_call.1
$region0: #{tpu_custom_call.1}
  #allocation0 [shape = 'u32[]', space=smem, size = 0x4, offset = 0x4, fixed_abs, tag = 'smem constant byte address 0x4 - core index']
  #allocation1 [shape = 'u32[144,128]{1,0:T(1,128)}', space=vmem, size = 0x12000, scoped, tag = 'internal scratch']
  %s0 = inlined_call_operand.hbm [shape: f32[1024,512], index: 0, kind: input, shape index: {}]
  %s1 = inlined_call_operand.hbm [shape: f32[1024,512], index: 1, kind: output, shape index: {}]
  %s2 = sld [smem:[#allocation0]]
  $region41: #{tpu_custom_call.1} parent=0
    _
  %s4 = ssub.s32 1, %s2
  %s5 = scalar_select 0, %s4, %s2
  $region1: #{tpu_custom_call.1} parent=0
    #allocation2 [shape = 'u8[2097152]{0}', space=vmem, size = 0x200000, scoped, tag = 'input window, operand 0']
    #allocation3 [shape = 's32[2]{0}', space=sflag, size = 0x8, scoped, tag = 'scoped memory for tpu_custom_call.1']
    #allocation4 [shape = 's32[2]{0}', space=sflag, size = 0x8, scoped, tag = 'scoped memory for tpu_custom_call.1']
    #allocation5 [shape = 'u8[2097152]{0}', space=vmem, size = 0x200000, scoped, tag = 'output window, operand 0']
    %6 = vsyncpa [#allocation3], 0
    %s7 = scalar_lea.sflag [#allocation3], 1
    %8 = vsyncpa %s7, 0
    %9 = vsyncpa [#allocation4], 0
    %s10 = scalar_lea.sflag [#allocation4], 1
    %11 = vsyncpa %s10, 0
    loop: start=0, step=1, limit=4
    $region2: #{tpu_custom_call.1} parent=1 // loop_pre_header
      _
    $region3: #{tpu_custom_call.1} parent=1 // loop_header
      %s13 = sphi 0, %s17
      %p14 = scmp.ge.s32.totalorder %s13, 4
      %s23 = sphi 0, %s25
      %s26 = sphi 0, %s23
      %s27 = sphi 0, %s26
      %s43 = sphi 0, %s27
      %s49 = sphi 0, %s51
      %s52 = sphi 0, %s49
      %s53 = sphi 0, %s52
      %s69 = sphi 0, %s53
    $region4: #{tpu_custom_call.1} parent=1 // loop_header_branch
      %16 = sbr.rel (%p14) target = $region8
    $region5: #{tpu_custom_call.1} parent=1 // loop_body
      %s18 = ssub.s32 %s13, 1
      %s19 = ssub.s32 %s13, 2
      %s20 = sadd.s32 %s13, 1
      %s21 = ssub.s32 %s13, %s20
      %p22 = scmp.eq.s32.totalorder %s21, 0
      %s24 = sadd.s32 %s23, 1
      %s25 = scalar_select %p22, %s23, %s24
      %p28 = pneg %p22
      %p29 = scmp.eq.s32.totalorder %s13, 1
      %p30 = por %p28, %p29
      %p31 = scmp.ne.s32.totalorder %s23, %s26
      %p32 = scmp.eq.s32.totalorder %s13, 0
      %p33 = por %p31, %p32
      %p34 = scmp.ne.s32.totalorder %s23, %s26
      %p35 = scmp.eq.s32.totalorder %s18, 1
      %p36 = por %p34, %p35
      %p37 = scmp.ne.s32.totalorder %s26, %s27
      %p38 = scmp.eq.s32.totalorder %s18, 0
      %p39 = por %p37, %p38
      %p40 = scmp.ne.s32.totalorder %s26, %s27
      %p41 = scmp.eq.s32.totalorder %s19, 1
      %p42 = por %p40, %p41
      %p44 = scmp.ne.s32.totalorder %s27, %s43
      %p45 = scmp.eq.s32.totalorder %s19, 0
      %p46 = por %p44, %p45
      %s47 = ssub.s32 %s13, %s20
      %p48 = scmp.eq.s32.totalorder %s47, 0
      %s50 = sadd.s32 %s49, 1
      %s51 = scalar_select %p48, %s49, %s50
      %p54 = pneg %p48
      %p55 = scmp.eq.s32.totalorder %s13, 1
      %p56 = por %p54, %p55
      %p57 = scmp.ne.s32.totalorder %s49, %s52
      %p58 = scmp.eq.s32.totalorder %s13, 0
      %p59 = por %p57, %p58
      %p60 = scmp.ne.s32.totalorder %s49, %s52
      %p61 = scmp.eq.s32.totalorder %s18, 1
      %p62 = por %p60, %p61
      %p63 = scmp.ne.s32.totalorder %s52, %s53
      %p64 = scmp.eq.s32.totalorder %s18, 0
      %p65 = por %p63, %p64
      %p66 = scmp.ne.s32.totalorder %s52, %s53
      %p67 = scmp.eq.s32.totalorder %s19, 1
      %p68 = por %p66, %p67
      %p70 = scmp.ne.s32.totalorder %s53, %s69
      %p71 = scmp.eq.s32.totalorder %s19, 0
      %p72 = por %p70, %p71
      %p73 = scmp.le.s32.totalorder 1, %s13
      %p74 = scmp.lt.s32.totalorder %s13, 3
      %p75 = pnand %p73, %p74
      %p76 = pneg %p75
      // Predicated region
      $region9: #{tpu_custom_call.1} parent=5 // pred_check
        _
      $region10: #{tpu_custom_call.1} parent=5 // pred_check_branch
        %78 = sbr.rel (%p75) target = $region12
      $region11: #{tpu_custom_call.1} parent=5 // pred_region
        %s79 = ssub.s32 %s13, 1
      $region12: #{tpu_custom_call.1} parent=5 // pred_fallthru
        _
      %p80 = scmp.lt.s32.totalorder %s13, 2
      // Predicated region
      $region13: #{tpu_custom_call.1} parent=5 // pred_check
        %p81 = pneg %p80
      $region14: #{tpu_custom_call.1} parent=5 // pred_check_branch
        %83 = sbr.rel (%p81) target = $region16
      $region15: #{tpu_custom_call.1} parent=5 // pred_region
        // Predicated region
        $region17: #{tpu_custom_call.1} parent=15 // pred_check
          %p84 = pneg %p33
        $region18: #{tpu_custom_call.1} parent=15 // pred_check_branch
          %86 = sbr.rel (%p84) target = $region20
        $region19: #{tpu_custom_call.1} parent=15 // pred_region
          %s87 = sand.u32 %s23, 1
          %s88 = scalar_lea.sflag [#allocation3], %s87
          %s89 = sand.u32 %s23, 1
          %s90 = smul.addr %s89, 2048
          %s91 = scalar_lea.vmem [#allocation2], %s90
          %s92 = smul.u32 64, %s13
          %s94 = ssub.s32 32768, 32768
          %95 = vsyncadd %s88, %s94
          %s96 = smul.addr %s92, 4
          %s97 = smul.addr %s96, 128
          %s98 = scalar_lea.hbm %s0, %s97
          %s99 = sshll.u32 %s91, 4
          %s100 = int_to_ptr.vmem [resolvable:$true] %s99
          %105 = dma.hbm_to_vmem [thread:$0]  %s98, 32768, %s100, %s88, 512, 512, 32
        $region20: #{tpu_custom_call.1} parent=15 // pred_fallthru
          _
      $region16: #{tpu_custom_call.1} parent=5 // pred_fallthru
        _
      %p106 = scmp.le.s32.totalorder 1, %s13
      %p107 = scmp.lt.s32.totalorder %s13, 3
      %p108 = pnand %p106, %p107
      %p109 = pneg %p108
      // Predicated region
      $region21: #{tpu_custom_call.1} parent=5 // pred_check
        _
      $region22: #{tpu_custom_call.1} parent=5 // pred_check_branch
        %111 = sbr.rel (%p108) target = $region24
      $region23: #{tpu_custom_call.1} parent=5 // pred_region
        %s112 = ssub.s32 %s13, 1
        %s113 = sand.u32 %s26, 1
        %s114 = scalar_lea.sflag [#allocation3], %s113
        %s115 = sand.u32 %s26, 1
        %s116 = smul.addr %s115, 2048
        %s117 = scalar_lea.vmem [#allocation2], %s116
        // Predicated region
        $region25: #{tpu_custom_call.1} parent=23 // pred_check
          %p118 = pneg %p39
        $region26: #{tpu_custom_call.1} parent=23 // pred_check_branch
          %120 = sbr.rel (%p118) target = $region28
        $region27: #{tpu_custom_call.1} parent=23 // pred_region
          %121 = dma.done %s114, 32768
        $region28: #{tpu_custom_call.1} parent=23 // pred_fallthru
          _
        %s122 = sand.u32 %s26, 1
        %s123 = scalar_lea.sflag [#allocation3], %s122
        %s124 = sand.u32 %s26, 1
        %s125 = smul.addr %s124, 2048
        %s126 = scalar_lea.vmem [#allocation2], %s125
        %p127 = pneg %p39
        %p128 = pneg %p36
        %p129 = pneg %p65
        %p130 = pneg %p62
        %s131 = sand.u32 %s52, 1
        %s132 = scalar_lea.sflag [#allocation4], %s131
        %s133 = sand.u32 %s52, 1
        %s134 = smul.addr %s133, 2048
        %s135 = scalar_lea.vmem [#allocation5], %s134
        %s136 = smul.u32 64, %s18
        %s137 = smul.u32 64, %s18
        %v138 = vld [vmem:[%s117] sm:$0xff]
        %v139 = vld [vmem:[%s117 + $0x8] sm:$0xff]
        %v140 = vld [vmem:[%s117 + $0x10] sm:$0xff]
        %v141 = vld [vmem:[%s117 + $0x18] sm:$0xff]
        %v142 = vld [vmem:[%s117 + $0x20] sm:$0xff]
        %v143 = vld [vmem:[%s117 + $0x28] sm:$0xff]
        %v144 = vld [vmem:[%s117 + $0x30] sm:$0xff]
        %v145 = vld [vmem:[%s117 + $0x38] sm:$0xff]
        %v146 = vld [vmem:[%s117 + $0x40] sm:$0xff]
        %v147 = vld [vmem:[%s117 + $0x48] sm:$0xff]
        %v148 = vld [vmem:[%s117 + $0x50] sm:$0xff]
        %v149 = vld [vmem:[%s117 + $0x58] sm:$0xff]
        %v150 = vld [vmem:[%s117 + $0x60] sm:$0xff]
        %v151 = vld [vmem:[%s117 + $0x68] sm:$0xff]
        %v152 = vld [vmem:[%s117 + $0x70] sm:$0xff]
        %v153 = vld [vmem:[%s117 + $0x78] sm:$0xff]
        %v154 = vld [vmem:[%s117 + $0x80] sm:$0xff]
        %v155 = vld [vmem:[%s117 + $0x88] sm:$0xff]
        %v156 = vld [vmem:[%s117 + $0x90] sm:$0xff]
        %v157 = vld [vmem:[%s117 + $0x98] sm:$0xff]
        %v158 = vld [vmem:[%s117 + $0xa0] sm:$0xff]
        %v159 = vld [vmem:[%s117 + $0xa8] sm:$0xff]
        %v160 = vld [vmem:[%s117 + $0xb0] sm:$0xff]
        %v161 = vld [vmem:[%s117 + $0xb8] sm:$0xff]
        %v162 = vld [vmem:[%s117 + $0xc0] sm:$0xff]
        %v163 = vld [vmem:[%s117 + $0xc8] sm:$0xff]
        %v164 = vld [vmem:[%s117 + $0xd0] sm:$0xff]
        %v165 = vld [vmem:[%s117 + $0xd8] sm:$0xff]
        %v166 = vld [vmem:[%s117 + $0xe0] sm:$0xff]
        %v167 = vld [vmem:[%s117 + $0xe8] sm:$0xff]
        %v168 = vld [vmem:[%s117 + $0xf0] sm:$0xff]
        %v169 = vld [vmem:[%s117 + $0xf8] sm:$0xff]
        %v170 = vld [vmem:[%s117 + $0x100] sm:$0xff]
        %v171 = vld [vmem:[%s117 + $0x108] sm:$0xff]
        %v172 = vld [vmem:[%s117 + $0x110] sm:$0xff]
        %v173 = vld [vmem:[%s117 + $0x118] sm:$0xff]
        %v174 = vld [vmem:[%s117 + $0x120] sm:$0xff]
        %v175 = vld [vmem:[%s117 + $0x128] sm:$0xff]
        %v176 = vld [vmem:[%s117 + $0x130] sm:$0xff]
        %v177 = vld [vmem:[%s117 + $0x138] sm:$0xff]
        %v178 = vld [vmem:[%s117 + $0x140] sm:$0xff]
        %v179 = vld [vmem:[%s117 + $0x148] sm:$0xff]
        %v180 = vld [vmem:[%s117 + $0x150] sm:$0xff]
        %v181 = vld [vmem:[%s117 + $0x158] sm:$0xff]
        %v182 = vld [vmem:[%s117 + $0x160] sm:$0xff]
        %v183 = vld [vmem:[%s117 + $0x168] sm:$0xff]
        %v184 = vld [vmem:[%s117 + $0x170] sm:$0xff]
        %v185 = vld [vmem:[%s117 + $0x178] sm:$0xff]
        %v186 = vld [vmem:[%s117 + $0x180] sm:$0xff]
        %v187 = vld [vmem:[%s117 + $0x188] sm:$0xff]
        %v188 = vld [vmem:[%s117 + $0x190] sm:$0xff]
        %v189 = vld [vmem:[%s117 + $0x198] sm:$0xff]
        %v190 = vld [vmem:[%s117 + $0x1a0] sm:$0xff]
        %v191 = vld [vmem:[%s117 + $0x1a8] sm:$0xff]
        %v192 = vld [vmem:[%s117 + $0x1b0] sm:$0xff]
        %v193 = vld [vmem:[%s117 + $0x1b8] sm:$0xff]
        %v194 = vld [vmem:[%s117 + $0x1c0] sm:$0xff]
        %v195 = vld [vmem:[%s117 + $0x1c8] sm:$0xff]
        %v196 = vld [vmem:[%s117 + $0x1d0] sm:$0xff]
        %v197 = vld [vmem:[%s117 + $0x1d8] sm:$0xff]
        %v198 = vld [vmem:[%s117 + $0x1e0] sm:$0xff]
        %v199 = vld [vmem:[%s117 + $0x1e8] sm:$0xff]
        %v200 = vld [vmem:[%s117 + $0x1f0] sm:$0xff]
        %v201 = vld [vmem:[%s117 + $0x1f8] sm:$0xff]
        %v202 = vld [vmem:[%s117 + $0x200] sm:$0xff]
        %v203 = vld [vmem:[%s117 + $0x208] sm:$0xff]
        %v204 = vld [vmem:[%s117 + $0x210] sm:$0xff]
        %v205 = vld [vmem:[%s117 + $0x218] sm:$0xff]
        %v206 = vld [vmem:[%s117 + $0x220] sm:$0xff]
        %v207 = vld [vmem:[%s117 + $0x228] sm:$0xff]
        %v208 = vld [vmem:[%s117 + $0x230] sm:$0xff]
        %v209 = vld [vmem:[%s117 + $0x238] sm:$0xff]
        %v210 = vld [vmem:[%s117 + $0x240] sm:$0xff]
        %v211 = vld [vmem:[%s117 + $0x248] sm:$0xff]
        %v212 = vld [vmem:[%s117 + $0x250] sm:$0xff]
        %v213 = vld [vmem:[%s117 + $0x258] sm:$0xff]
        %v214 = vld [vmem:[%s117 + $0x260] sm:$0xff]
        %v215 = vld [vmem:[%s117 + $0x268] sm:$0xff]
        %v216 = vld [vmem:[%s117 + $0x270] sm:$0xff]
        %v217 = vld [vmem:[%s117 + $0x278] sm:$0xff]
        %v218 = vld [vmem:[%s117 + $0x280] sm:$0xff]
        %v219 = vld [vmem:[%s117 + $0x288] sm:$0xff]
        %v220 = vld [vmem:[%s117 + $0x290] sm:$0xff]
        %v221 = vld [vmem:[%s117 + $0x298] sm:$0xff]
        %v222 = vld [vmem:[%s117 + $0x2a0] sm:$0xff]
        %v223 = vld [vmem:[%s117 + $0x2a8] sm:$0xff]
        %v224 = vld [vmem:[%s117 + $0x2b0] sm:$0xff]
        %v225 = vld [vmem:[%s117 + $0x2b8] sm:$0xff]
        %v226 = vld [vmem:[%s117 + $0x2c0] sm:$0xff]
        %v227 = vld [vmem:[%s117 + $0x2c8] sm:$0xff]
        %v228 = vld [vmem:[%s117 + $0x2d0] sm:$0xff]
        %v229 = vld [vmem:[%s117 + $0x2d8] sm:$0xff]
        %v230 = vld [vmem:[%s117 + $0x2e0] sm:$0xff]
        %v231 = vld [vmem:[%s117 + $0x2e8] sm:$0xff]
        %v232 = vld [vmem:[%s117 + $0x2f0] sm:$0xff]
        %v233 = vld [vmem:[%s117 + $0x2f8] sm:$0xff]
        %v234 = vld [vmem:[%s117 + $0x300] sm:$0xff]
        %v235 = vld [vmem:[%s117 + $0x308] sm:$0xff]
        %v236 = vld [vmem:[%s117 + $0x310] sm:$0xff]
        %v237 = vld [vmem:[%s117 + $0x318] sm:$0xff]
        %v238 = vld [vmem:[%s117 + $0x320] sm:$0xff]
        %v239 = vld [vmem:[%s117 + $0x328] sm:$0xff]
        %v240 = vld [vmem:[%s117 + $0x330] sm:$0xff]
        %v241 = vld [vmem:[%s117 + $0x338] sm:$0xff]
        %v242 = vld [vmem:[%s117 + $0x340] sm:$0xff]
        %v243 = vld [vmem:[%s117 + $0x348] sm:$0xff]
        %v244 = vld [vmem:[%s117 + $0x350] sm:$0xff]
        %v245 = vld [vmem:[%s117 + $0x358] sm:$0xff]
        %v246 = vld [vmem:[%s117 + $0x360] sm:$0xff]
        %v247 = vld [vmem:[%s117 + $0x368] sm:$0xff]
        %v248 = vld [vmem:[%s117 + $0x370] sm:$0xff]
        %v249 = vld [vmem:[%s117 + $0x378] sm:$0xff]
        %v250 = vld [vmem:[%s117 + $0x380] sm:$0xff]
        %v251 = vld [vmem:[%s117 + $0x388] sm:$0xff]
        %v252 = vld [vmem:[%s117 + $0x390] sm:$0xff]
        %v253 = vld [vmem:[%s117 + $0x398] sm:$0xff]
        %v254 = vld [vmem:[%s117 + $0x3a0] sm:$0xff]
        %v255 = vld [vmem:[%s117 + $0x3a8] sm:$0xff]
        %v256 = vld [vmem:[%s117 + $0x3b0] sm:$0xff]
        %v257 = vld [vmem:[%s117 + $0x3b8] sm:$0xff]
        %v258 = vld [vmem:[%s117 + $0x3c0] sm:$0xff]
        %v259 = vld [vmem:[%s117 + $0x3c8] sm:$0xff]
        %v260 = vld [vmem:[%s117 + $0x3d0] sm:$0xff]
        %v261 = vld [vmem:[%s117 + $0x3d8] sm:$0xff]
        %v262 = vld [vmem:[%s117 + $0x3e0] sm:$0xff]
        %v263 = vld [vmem:[%s117 + $0x3e8] sm:$0xff]
        %v264 = vld [vmem:[%s117 + $0x3f0] sm:$0xff]
        %v265 = vld [vmem:[%s117 + $0x3f8] sm:$0xff]
        %v266 = vld [vmem:[%s117 + $0x400] sm:$0xff]
        %v267 = vld [vmem:[%s117 + $0x408] sm:$0xff]
        %v268 = vld [vmem:[%s117 + $0x410] sm:$0xff]
        %v269 = vld [vmem:[%s117 + $0x418] sm:$0xff]
        %v270 = vld [vmem:[%s117 + $0x420] sm:$0xff]
        %v271 = vld [vmem:[%s117 + $0x428] sm:$0xff]
        %v272 = vld [vmem:[%s117 + $0x430] sm:$0xff]
        %v273 = vld [vmem:[%s117 + $0x438] sm:$0xff]
        %v274 = vld [vmem:[%s117 + $0x440] sm:$0xff]
        %v275 = vld [vmem:[%s117 + $0x448] sm:$0xff]
        %v276 = vld [vmem:[%s117 + $0x450] sm:$0xff]
        %v277 = vld [vmem:[%s117 + $0x458] sm:$0xff]
        %v278 = vld [vmem:[%s117 + $0x460] sm:$0xff]
        %v279 = vld [vmem:[%s117 + $0x468] sm:$0xff]
        %v280 = vld [vmem:[%s117 + $0x470] sm:$0xff]
        %v281 = vld [vmem:[%s117 + $0x478] sm:$0xff]
        %v282 = vld [vmem:[%s117 + $0x480] sm:$0xff]
        %v283 = vld [vmem:[%s117 + $0x488] sm:$0xff]
        %v284 = vld [vmem:[%s117 + $0x490] sm:$0xff]
        %v285 = vld [vmem:[%s117 + $0x498] sm:$0xff]
        %v286 = vld [vmem:[%s117 + $0x4a0] sm:$0xff]
        %v287 = vld [vmem:[%s117 + $0x4a8] sm:$0xff]
        %v288 = vld [vmem:[%s117 + $0x4b0] sm:$0xff]
        %v289 = vld [vmem:[%s117 + $0x4b8] sm:$0xff]
        %v290 = vld [vmem:[%s117 + $0x4c0] sm:$0xff]
        %v291 = vld [vmem:[%s117 + $0x4c8] sm:$0xff]
        %v292 = vld [vmem:[%s117 + $0x4d0] sm:$0xff]
        %v293 = vld [vmem:[%s117 + $0x4d8] sm:$0xff]
        %v294 = vld [vmem:[%s117 + $0x4e0] sm:$0xff]
        %v295 = vld [vmem:[%s117 + $0x4e8] sm:$0xff]
        %v296 = vld [vmem:[%s117 + $0x4f0] sm:$0xff]
        %v297 = vld [vmem:[%s117 + $0x4f8] sm:$0xff]
        %v298 = vld [vmem:[%s117 + $0x500] sm:$0xff]
        %v299 = vld [vmem:[%s117 + $0x508] sm:$0xff]
        %v300 = vld [vmem:[%s117 + $0x510] sm:$0xff]
        %v301 = vld [vmem:[%s117 + $0x518] sm:$0xff]
        %v302 = vld [vmem:[%s117 + $0x520] sm:$0xff]
        %v303 = vld [vmem:[%s117 + $0x528] sm:$0xff]
        %v304 = vld [vmem:[%s117 + $0x530] sm:$0xff]
        %v305 = vld [vmem:[%s117 + $0x538] sm:$0xff]
        %v306 = vld [vmem:[%s117 + $0x540] sm:$0xff]
        %v307 = vld [vmem:[%s117 + $0x548] sm:$0xff]
        %v308 = vld [vmem:[%s117 + $0x550] sm:$0xff]
        %v309 = vld [vmem:[%s117 + $0x558] sm:$0xff]
        %v310 = vld [vmem:[%s117 + $0x560] sm:$0xff]
        %v311 = vld [vmem:[%s117 + $0x568] sm:$0xff]
        %v312 = vld [vmem:[%s117 + $0x570] sm:$0xff]
        %v313 = vld [vmem:[%s117 + $0x578] sm:$0xff]
        %v314 = vld [vmem:[%s117 + $0x580] sm:$0xff]
        %v315 = vld [vmem:[%s117 + $0x588] sm:$0xff]
        %v316 = vld [vmem:[%s117 + $0x590] sm:$0xff]
        %v317 = vld [vmem:[%s117 + $0x598] sm:$0xff]
        %v318 = vld [vmem:[%s117 + $0x5a0] sm:$0xff]
        %v319 = vld [vmem:[%s117 + $0x5a8] sm:$0xff]
        %v320 = vld [vmem:[%s117 + $0x5b0] sm:$0xff]
        %v321 = vld [vmem:[%s117 + $0x5b8] sm:$0xff]
        %v322 = vld [vmem:[%s117 + $0x5c0] sm:$0xff]
        %v323 = vld [vmem:[%s117 + $0x5c8] sm:$0xff]
        %v324 = vld [vmem:[%s117 + $0x5d0] sm:$0xff]
        %v325 = vld [vmem:[%s117 + $0x5d8] sm:$0xff]
        %v326 = vld [vmem:[%s117 + $0x5e0] sm:$0xff]
        %v327 = vld [vmem:[%s117 + $0x5e8] sm:$0xff]
        %v328 = vld [vmem:[%s117 + $0x5f0] sm:$0xff]
        %v329 = vld [vmem:[%s117 + $0x5f8] sm:$0xff]
        %v330 = vld [vmem:[%s117 + $0x600] sm:$0xff]
        %v331 = vld [vmem:[%s117 + $0x608] sm:$0xff]
        %v332 = vld [vmem:[%s117 + $0x610] sm:$0xff]
        %v333 = vld [vmem:[%s117 + $0x618] sm:$0xff]
        %v334 = vld [vmem:[%s117 + $0x620] sm:$0xff]
        %v335 = vld [vmem:[%s117 + $0x628] sm:$0xff]
        %v336 = vld [vmem:[%s117 + $0x630] sm:$0xff]
        %v337 = vld [vmem:[%s117 + $0x638] sm:$0xff]
        %v338 = vld [vmem:[%s117 + $0x640] sm:$0xff]
        %v339 = vld [vmem:[%s117 + $0x648] sm:$0xff]
        %v340 = vld [vmem:[%s117 + $0x650] sm:$0xff]
        %v341 = vld [vmem:[%s117 + $0x658] sm:$0xff]
        %v342 = vld [vmem:[%s117 + $0x660] sm:$0xff]
        %v343 = vld [vmem:[%s117 + $0x668] sm:$0xff]
        %v344 = vld [vmem:[%s117 + $0x670] sm:$0xff]
        %v345 = vld [vmem:[%s117 + $0x678] sm:$0xff]
        %v346 = vld [vmem:[%s117 + $0x680] sm:$0xff]
        %v347 = vld [vmem:[%s117 + $0x688] sm:$0xff]
        %v348 = vld [vmem:[%s117 + $0x690] sm:$0xff]
        %v349 = vld [vmem:[%s117 + $0x698] sm:$0xff]
        %v350 = vld [vmem:[%s117 + $0x6a0] sm:$0xff]
        %v351 = vld [vmem:[%s117 + $0x6a8] sm:$0xff]
        %v352 = vld [vmem:[%s117 + $0x6b0] sm:$0xff]
        %v353 = vld [vmem:[%s117 + $0x6b8] sm:$0xff]
        %v354 = vld [vmem:[%s117 + $0x6c0] sm:$0xff]
        %v355 = vld [vmem:[%s117 + $0x6c8] sm:$0xff]
        %v356 = vld [vmem:[%s117 + $0x6d0] sm:$0xff]
        %v357 = vld [vmem:[%s117 + $0x6d8] sm:$0xff]
        %v358 = vld [vmem:[%s117 + $0x6e0] sm:$0xff]
        %v359 = vld [vmem:[%s117 + $0x6e8] sm:$0xff]
        %v360 = vld [vmem:[%s117 + $0x6f0] sm:$0xff]
        %v361 = vld [vmem:[%s117 + $0x6f8] sm:$0xff]
        %v362 = vld [vmem:[%s117 + $0x700] sm:$0xff]
        %v363 = vld [vmem:[%s117 + $0x708] sm:$0xff]
        %v364 = vld [vmem:[%s117 + $0x710] sm:$0xff]
        %v365 = vld [vmem:[%s117 + $0x718] sm:$0xff]
        %v366 = vld [vmem:[%s117 + $0x720] sm:$0xff]
        %v367 = vld [vmem:[%s117 + $0x728] sm:$0xff]
        %v368 = vld [vmem:[%s117 + $0x730] sm:$0xff]
        %v369 = vld [vmem:[%s117 + $0x738] sm:$0xff]
        %v370 = vld [vmem:[%s117 + $0x740] sm:$0xff]
        %v371 = vld [vmem:[%s117 + $0x748] sm:$0xff]
        %v372 = vld [vmem:[%s117 + $0x750] sm:$0xff]
        %v373 = vld [vmem:[%s117 + $0x758] sm:$0xff]
        %v374 = vld [vmem:[%s117 + $0x760] sm:$0xff]
        %v375 = vld [vmem:[%s117 + $0x768] sm:$0xff]
        %v376 = vld [vmem:[%s117 + $0x770] sm:$0xff]
        %v377 = vld [vmem:[%s117 + $0x778] sm:$0xff]
        %v378 = vld [vmem:[%s117 + $0x780] sm:$0xff]
        %v379 = vld [vmem:[%s117 + $0x788] sm:$0xff]
        %v380 = vld [vmem:[%s117 + $0x790] sm:$0xff]
        %v381 = vld [vmem:[%s117 + $0x798] sm:$0xff]
        %v382 = vld [vmem:[%s117 + $0x7a0] sm:$0xff]
        %v383 = vld [vmem:[%s117 + $0x7a8] sm:$0xff]
        %v384 = vld [vmem:[%s117 + $0x7b0] sm:$0xff]
        %v385 = vld [vmem:[%s117 + $0x7b8] sm:$0xff]
        %v386 = vld [vmem:[%s117 + $0x7c0] sm:$0xff]
        %v387 = vld [vmem:[%s117 + $0x7c8] sm:$0xff]
        %v388 = vld [vmem:[%s117 + $0x7d0] sm:$0xff]
        %v389 = vld [vmem:[%s117 + $0x7d8] sm:$0xff]
        %v390 = vld [vmem:[%s117 + $0x7e0] sm:$0xff]
        %v391 = vld [vmem:[%s117 + $0x7e8] sm:$0xff]
        %v392 = vld [vmem:[%s117 + $0x7f0] sm:$0xff]
        %v393 = vld [vmem:[%s117 + $0x7f8] sm:$0xff]
        %v394 = vmul.f32 %v138, 0.5
        %v395 = vmul.f32 %v139, 0.5
        %v396 = vmul.f32 %v140, 0.5
        %v397 = vmul.f32 %v141, 0.5
        %v398 = vmul.f32 %v142, 0.5
        %v399 = vmul.f32 %v143, 0.5
        %v400 = vmul.f32 %v144, 0.5
        %v401 = vmul.f32 %v145, 0.5
        %v402 = vmul.f32 %v146, 0.5
        %v403 = vmul.f32 %v147, 0.5
        %v404 = vmul.f32 %v148, 0.5
        %v405 = vmul.f32 %v149, 0.5
        %v406 = vmul.f32 %v150, 0.5
        %v407 = vmul.f32 %v151, 0.5
        %v408 = vmul.f32 %v152, 0.5
        %v409 = vmul.f32 %v153, 0.5
        %v410 = vmul.f32 %v154, 0.5
        %v411 = vmul.f32 %v155, 0.5
        %v412 = vmul.f32 %v156, 0.5
        %v413 = vmul.f32 %v157, 0.5
        %v414 = vmul.f32 %v158, 0.5
        %v415 = vmul.f32 %v159, 0.5
        %v416 = vmul.f32 %v160, 0.5
        %v417 = vmul.f32 %v161, 0.5
        %v418 = vmul.f32 %v162, 0.5
        %v419 = vmul.f32 %v163, 0.5
        %v420 = vmul.f32 %v164, 0.5
        %v421 = vmul.f32 %v165, 0.5
        %v422 = vmul.f32 %v166, 0.5
        %v423 = vmul.f32 %v167, 0.5
        %v424 = vmul.f32 %v168, 0.5
        %v425 = vmul.f32 %v169, 0.5
        %v426 = vmul.f32 %v170, 0.5
        %v427 = vmul.f32 %v171, 0.5
        %v428 = vmul.f32 %v172, 0.5
        %v429 = vmul.f32 %v173, 0.5
        %v430 = vmul.f32 %v174, 0.5
        %v431 = vmul.f32 %v175, 0.5
        %v432 = vmul.f32 %v176, 0.5
        %v433 = vmul.f32 %v177, 0.5
        %v434 = vmul.f32 %v178, 0.5
        %v435 = vmul.f32 %v179, 0.5
        %v436 = vmul.f32 %v180, 0.5
        %v437 = vmul.f32 %v181, 0.5
        %v438 = vmul.f32 %v182, 0.5
        %v439 = vmul.f32 %v183, 0.5
        %v440 = vmul.f32 %v184, 0.5
        %v441 = vmul.f32 %v185, 0.5
        %v442 = vmul.f32 %v186, 0.5
        %v443 = vmul.f32 %v187, 0.5
        %v444 = vmul.f32 %v188, 0.5
        %v445 = vmul.f32 %v189, 0.5
        %v446 = vmul.f32 %v190, 0.5
        %v447 = vmul.f32 %v191, 0.5
        %v448 = vmul.f32 %v192, 0.5
        %v449 = vmul.f32 %v193, 0.5
        %v450 = vmul.f32 %v194, 0.5
        %v451 = vmul.f32 %v195, 0.5
        %v452 = vmul.f32 %v196, 0.5
        %v453 = vmul.f32 %v197, 0.5
        %v454 = vmul.f32 %v198, 0.5
        %v455 = vmul.f32 %v199, 0.5
        %v456 = vmul.f32 %v200, 0.5
        %v457 = vmul.f32 %v201, 0.5
        %v458 = vmul.f32 %v202, 0.5
        %v459 = vmul.f32 %v203, 0.5
        %v460 = vmul.f32 %v204, 0.5
        %v461 = vmul.f32 %v205, 0.5
        %v462 = vmul.f32 %v206, 0.5
        %v463 = vmul.f32 %v207, 0.5
        %v464 = vmul.f32 %v208, 0.5
        %v465 = vmul.f32 %v209, 0.5
        %v466 = vmul.f32 %v210, 0.5
        %v467 = vmul.f32 %v211, 0.5
        %v468 = vmul.f32 %v212, 0.5
        %v469 = vmul.f32 %v213, 0.5
        %v470 = vmul.f32 %v214, 0.5
        %v471 = vmul.f32 %v215, 0.5
        %v472 = vmul.f32 %v216, 0.5
        %v473 = vmul.f32 %v217, 0.5
        %v474 = vmul.f32 %v218, 0.5
        %v475 = vmul.f32 %v219, 0.5
        %v476 = vmul.f32 %v220, 0.5
        %v477 = vmul.f32 %v221, 0.5
        %v478 = vmul.f32 %v222, 0.5
        %v479 = vmul.f32 %v223, 0.5
        %v480 = vmul.f32 %v224, 0.5
        %v481 = vmul.f32 %v225, 0.5
        %v482 = vmul.f32 %v226, 0.5
        %v483 = vmul.f32 %v227, 0.5
        %v484 = vmul.f32 %v228, 0.5
        %v485 = vmul.f32 %v229, 0.5
        %v486 = vmul.f32 %v230, 0.5
        %v487 = vmul.f32 %v231, 0.5
        %v488 = vmul.f32 %v232, 0.5
        %v489 = vmul.f32 %v233, 0.5
        %v490 = vmul.f32 %v234, 0.5
        %v491 = vmul.f32 %v235, 0.5
        %v492 = vmul.f32 %v236, 0.5
        %v493 = vmul.f32 %v237, 0.5
        %v494 = vmul.f32 %v238, 0.5
        %v495 = vmul.f32 %v239, 0.5
        %v496 = vmul.f32 %v240, 0.5
        %v497 = vmul.f32 %v241, 0.5
        %v498 = vmul.f32 %v242, 0.5
        %v499 = vmul.f32 %v243, 0.5
        %v500 = vmul.f32 %v244, 0.5
        %v501 = vmul.f32 %v245, 0.5
        %v502 = vmul.f32 %v246, 0.5
        %v503 = vmul.f32 %v247, 0.5
        %v504 = vmul.f32 %v248, 0.5
        %v505 = vmul.f32 %v249, 0.5
        %v506 = vmul.f32 %v250, 0.5
        %v507 = vmul.f32 %v251, 0.5
        %v508 = vmul.f32 %v252, 0.5
        %v509 = vmul.f32 %v253, 0.5
        %v510 = vmul.f32 %v254, 0.5
        %v511 = vmul.f32 %v255, 0.5
        %v512 = vmul.f32 %v256, 0.5
        %v513 = vmul.f32 %v257, 0.5
        %v514 = vmul.f32 %v258, 0.5
        %v515 = vmul.f32 %v259, 0.5
        %v516 = vmul.f32 %v260, 0.5
        %v517 = vmul.f32 %v261, 0.5
        %v518 = vmul.f32 %v262, 0.5
        %v519 = vmul.f32 %v263, 0.5
        %v520 = vmul.f32 %v264, 0.5
        %v521 = vmul.f32 %v265, 0.5
        %v522 = vmul.f32 %v266, 0.5
        %v523 = vmul.f32 %v267, 0.5
        %v524 = vmul.f32 %v268, 0.5
        %v525 = vmul.f32 %v269, 0.5
        %v526 = vmul.f32 %v270, 0.5
        %v527 = vmul.f32 %v271, 0.5
        %v528 = vmul.f32 %v272, 0.5
        %v529 = vmul.f32 %v273, 0.5
        %v530 = vmul.f32 %v274, 0.5
        %v531 = vmul.f32 %v275, 0.5
        %v532 = vmul.f32 %v276, 0.5
        %v533 = vmul.f32 %v277, 0.5
        %v534 = vmul.f32 %v278, 0.5
        %v535 = vmul.f32 %v279, 0.5
        %v536 = vmul.f32 %v280, 0.5
        %v537 = vmul.f32 %v281, 0.5
        %v538 = vmul.f32 %v282, 0.5
        %v539 = vmul.f32 %v283, 0.5
        %v540 = vmul.f32 %v284, 0.5
        %v541 = vmul.f32 %v285, 0.5
        %v542 = vmul.f32 %v286, 0.5
        %v543 = vmul.f32 %v287, 0.5
        %v544 = vmul.f32 %v288, 0.5
        %v545 = vmul.f32 %v289, 0.5
        %v546 = vmul.f32 %v290, 0.5
        %v547 = vmul.f32 %v291, 0.5
        %v548 = vmul.f32 %v292, 0.5
        %v549 = vmul.f32 %v293, 0.5
        %v550 = vmul.f32 %v294, 0.5
        %v551 = vmul.f32 %v295, 0.5
        %v552 = vmul.f32 %v296, 0.5
        %v553 = vmul.f32 %v297, 0.5
        %v554 = vmul.f32 %v298, 0.5
        %v555 = vmul.f32 %v299, 0.5
        %v556 = vmul.f32 %v300, 0.5
        %v557 = vmul.f32 %v301, 0.5
        %v558 = vmul.f32 %v302, 0.5
        %v559 = vmul.f32 %v303, 0.5
        %v560 = vmul.f32 %v304, 0.5
        %v561 = vmul.f32 %v305, 0.5
        %v562 = vmul.f32 %v306, 0.5
        %v563 = vmul.f32 %v307, 0.5
        %v564 = vmul.f32 %v308, 0.5
        %v565 = vmul.f32 %v309, 0.5
        %v566 = vmul.f32 %v310, 0.5
        %v567 = vmul.f32 %v311, 0.5
        %v568 = vmul.f32 %v312, 0.5
        %v569 = vmul.f32 %v313, 0.5
        %v570 = vmul.f32 %v314, 0.5
        %v571 = vmul.f32 %v315, 0.5
        %v572 = vmul.f32 %v316, 0.5
        %v573 = vmul.f32 %v317, 0.5
        %v574 = vmul.f32 %v318, 0.5
        %v575 = vmul.f32 %v319, 0.5
        %v576 = vmul.f32 %v320, 0.5
        %v577 = vmul.f32 %v321, 0.5
        %v578 = vmul.f32 %v322, 0.5
        %v579 = vmul.f32 %v323, 0.5
        %v580 = vmul.f32 %v324, 0.5
        %v581 = vmul.f32 %v325, 0.5
        %v582 = vmul.f32 %v326, 0.5
        %v583 = vmul.f32 %v327, 0.5
        %v584 = vmul.f32 %v328, 0.5
        %v585 = vmul.f32 %v329, 0.5
        %v586 = vmul.f32 %v330, 0.5
        %v587 = vmul.f32 %v331, 0.5
        %v588 = vmul.f32 %v332, 0.5
        %v589 = vmul.f32 %v333, 0.5
        %v590 = vmul.f32 %v334, 0.5
        %v591 = vmul.f32 %v335, 0.5
        %v592 = vmul.f32 %v336, 0.5
        %v593 = vmul.f32 %v337, 0.5
        %v594 = vmul.f32 %v338, 0.5
        %v595 = vmul.f32 %v339, 0.5
        %v596 = vmul.f32 %v340, 0.5
        %v597 = vmul.f32 %v341, 0.5
        %v598 = vmul.f32 %v342, 0.5
        %v599 = vmul.f32 %v343, 0.5
        %v600 = vmul.f32 %v344, 0.5
        %v601 = vmul.f32 %v345, 0.5
        %v602 = vmul.f32 %v346, 0.5
        %v603 = vmul.f32 %v347, 0.5
        %v604 = vmul.f32 %v348, 0.5
        %v605 = vmul.f32 %v349, 0.5
        %v606 = vmul.f32 %v350, 0.5
        %v607 = vmul.f32 %v351, 0.5
        %v608 = vmul.f32 %v352, 0.5
        %v609 = vmul.f32 %v353, 0.5
        %v610 = vmul.f32 %v354, 0.5
        %v611 = vmul.f32 %v355, 0.5
        %v612 = vmul.f32 %v356, 0.5
        %v613 = vmul.f32 %v357, 0.5
        %v614 = vmul.f32 %v358, 0.5
        %v615 = vmul.f32 %v359, 0.5
        %v616 = vmul.f32 %v360, 0.5
        %v617 = vmul.f32 %v361, 0.5
        %v618 = vmul.f32 %v362, 0.5
        %v619 = vmul.f32 %v363, 0.5
        %v620 = vmul.f32 %v364, 0.5
        %v621 = vmul.f32 %v365, 0.5
        %v622 = vmul.f32 %v366, 0.5
        %v623 = vmul.f32 %v367, 0.5
        %v624 = vmul.f32 %v368, 0.5
        %v625 = vmul.f32 %v369, 0.5
        %v626 = vmul.f32 %v370, 0.5
        %v627 = vmul.f32 %v371, 0.5
        %v628 = vmul.f32 %v372, 0.5
        %v629 = vmul.f32 %v373, 0.5
        %v630 = vmul.f32 %v374, 0.5
        %v631 = vmul.f32 %v375, 0.5
        %v632 = vmul.f32 %v376, 0.5
        %v633 = vmul.f32 %v377, 0.5
        %v634 = vmul.f32 %v378, 0.5
        %v635 = vmul.f32 %v379, 0.5
        %v636 = vmul.f32 %v380, 0.5
        %v637 = vmul.f32 %v381, 0.5
        %v638 = vmul.f32 %v382, 0.5
        %v639 = vmul.f32 %v383, 0.5
        %v640 = vmul.f32 %v384, 0.5
        %v641 = vmul.f32 %v385, 0.5
        %v642 = vmul.f32 %v386, 0.5
        %v643 = vmul.f32 %v387, 0.5
        %v644 = vmul.f32 %v388, 0.5
        %v645 = vmul.f32 %v389, 0.5
        %v646 = vmul.f32 %v390, 0.5
        %v647 = vmul.f32 %v391, 0.5
        %v648 = vmul.f32 %v392, 0.5
        %v649 = vmul.f32 %v393, 0.5
        %v650 = vtanh.pop %v394
        %v651 = vtanh.pop %v395
        %v652 = vtanh.pop %v396
        %v653 = vtanh.pop %v397
        %v654 = vtanh.pop %v398
        %v655 = vtanh.pop %v399
        %v656 = vtanh.pop %v400
        %v657 = vtanh.pop %v401
        %v658 = vtanh.pop %v402
        %v659 = vtanh.pop %v403
        %v660 = vtanh.pop %v404
        %v661 = vtanh.pop %v405
        %v662 = vtanh.pop %v406
        %v663 = vtanh.pop %v407
        %v664 = vtanh.pop %v408
        %v665 = vtanh.pop %v409
        %v666 = vtanh.pop %v410
        %v667 = vtanh.pop %v411
        %v668 = vtanh.pop %v412
        %v669 = vtanh.pop %v413
        %v670 = vtanh.pop %v414
        %v671 = vtanh.pop %v415
        %v672 = vtanh.pop %v416
        %v673 = vtanh.pop %v417
        %v674 = vtanh.pop %v418
        %v675 = vtanh.pop %v419
        %v676 = vtanh.pop %v420
        %v677 = vtanh.pop %v421
        %v678 = vtanh.pop %v422
        %v679 = vtanh.pop %v423
        %v680 = vtanh.pop %v424
        %v681 = vtanh.pop %v425
        %v682 = vtanh.pop %v426
        %v683 = vtanh.pop %v427
        %v684 = vtanh.pop %v428
        %v685 = vtanh.pop %v429
        %v686 = vtanh.pop %v430
        %v687 = vtanh.pop %v431
        %v688 = vtanh.pop %v432
        %v689 = vtanh.pop %v433
        %v690 = vtanh.pop %v434
        %v691 = vtanh.pop %v435
        %v692 = vtanh.pop %v436
        %v693 = vtanh.pop %v437
        %v694 = vtanh.pop %v438
        %v695 = vtanh.pop %v439
        %v696 = vtanh.pop %v440
        %v697 = vtanh.pop %v441
        %v698 = vtanh.pop %v442
        %v699 = vtanh.pop %v443
        %v700 = vtanh.pop %v444
        %v701 = vtanh.pop %v445
        %v702 = vtanh.pop %v446
        %v703 = vtanh.pop %v447
        %v704 = vtanh.pop %v448
        %v705 = vtanh.pop %v449
        %v706 = vtanh.pop %v450
        %v707 = vtanh.pop %v451
        %v708 = vtanh.pop %v452
        %v709 = vtanh.pop %v453
        %v710 = vtanh.pop %v454
        %v711 = vtanh.pop %v455
        %v712 = vtanh.pop %v456
        %v713 = vtanh.pop %v457
        %v714 = vtanh.pop %v458
        %v715 = vtanh.pop %v459
        %v716 = vtanh.pop %v460
        %v717 = vtanh.pop %v461
        %v718 = vtanh.pop %v462
        %v719 = vtanh.pop %v463
        %v720 = vtanh.pop %v464
        %v721 = vtanh.pop %v465
        %v722 = vtanh.pop %v466
        %v723 = vtanh.pop %v467
        %v724 = vtanh.pop %v468
        %v725 = vtanh.pop %v469
        %v726 = vtanh.pop %v470
        %v727 = vtanh.pop %v471
        %v728 = vtanh.pop %v472
        %v729 = vtanh.pop %v473
        %v730 = vtanh.pop %v474
        %v731 = vtanh.pop %v475
        %v732 = vtanh.pop %v476
        %v733 = vtanh.pop %v477
        %v734 = vtanh.pop %v478
        %v735 = vtanh.pop %v479
        %v736 = vtanh.pop %v480
        %v737 = vtanh.pop %v481
        %v738 = vtanh.pop %v482
        %v739 = vtanh.pop %v483
        %v740 = vtanh.pop %v484
        %v741 = vtanh.pop %v485
        %v742 = vtanh.pop %v486
        %v743 = vtanh.pop %v487
        %v744 = vtanh.pop %v488
        %v745 = vtanh.pop %v489
        %v746 = vtanh.pop %v490
        %v747 = vtanh.pop %v491
        %v748 = vtanh.pop %v492
        %v749 = vtanh.pop %v493
        %v750 = vtanh.pop %v494
        %v751 = vtanh.pop %v495
        %v752 = vtanh.pop %v496
        %v753 = vtanh.pop %v497
        %v754 = vtanh.pop %v498
        %v755 = vtanh.pop %v499
        %v756 = vtanh.pop %v500
        %v757 = vtanh.pop %v501
        %v758 = vtanh.pop %v502
        %v759 = vtanh.pop %v503
        %v760 = vtanh.pop %v504
        %v761 = vtanh.pop %v505
        %v762 = vtanh.pop %v506
        %v763 = vtanh.pop %v507
        %v764 = vtanh.pop %v508
        %v765 = vtanh.pop %v509
        %v766 = vtanh.pop %v510
        %v767 = vtanh.pop %v511
        %v768 = vtanh.pop %v512
        %v769 = vtanh.pop %v513
        %v770 = vtanh.pop %v514
        %v771 = vtanh.pop %v515
        %v772 = vtanh.pop %v516
        %v773 = vtanh.pop %v517
        %v774 = vtanh.pop %v518
        %v775 = vtanh.pop %v519
        %v776 = vtanh.pop %v520
        %v777 = vtanh.pop %v521
        %v778 = vtanh.pop %v522
        %v779 = vtanh.pop %v523
        %v780 = vtanh.pop %v524
        %v781 = vtanh.pop %v525
        %v782 = vtanh.pop %v526
        %v783 = vtanh.pop %v527
        %v784 = vtanh.pop %v528
        %v785 = vtanh.pop %v529
        %v786 = vtanh.pop %v530
        %v787 = vtanh.pop %v531
        %v788 = vtanh.pop %v532
        %v789 = vtanh.pop %v533
        %v790 = vtanh.pop %v534
        %v791 = vtanh.pop %v535
        %v792 = vtanh.pop %v536
        %v793 = vtanh.pop %v537
        %v794 = vtanh.pop %v538
        %v795 = vtanh.pop %v539
        %v796 = vtanh.pop %v540
        %v797 = vtanh.pop %v541
        %v798 = vtanh.pop %v542
        %v799 = vtanh.pop %v543
        %v800 = vtanh.pop %v544
        %v801 = vtanh.pop %v545
        %v802 = vtanh.pop %v546
        %v803 = vtanh.pop %v547
        %v804 = vtanh.pop %v548
        %v805 = vtanh.pop %v549
        %v806 = vtanh.pop %v550
        %v807 = vtanh.pop %v551
        %v808 = vtanh.pop %v552
        %v809 = vtanh.pop %v553
        %v810 = vtanh.pop %v554
        %v811 = vtanh.pop %v555
        %v812 = vtanh.pop %v556
        %v813 = vtanh.pop %v557
        %v814 = vtanh.pop %v558
        %v815 = vtanh.pop %v559
        %v816 = vtanh.pop %v560
        %v817 = vtanh.pop %v561
        %v818 = vtanh.pop %v562
        %v819 = vtanh.pop %v563
        %v820 = vtanh.pop %v564
        %v821 = vtanh.pop %v565
        %v822 = vtanh.pop %v566
        %v823 = vtanh.pop %v567
        %v824 = vtanh.pop %v568
        %v825 = vtanh.pop %v569
        %v826 = vtanh.pop %v570
        %v827 = vtanh.pop %v571
        %v828 = vtanh.pop %v572
        %v829 = vtanh.pop %v573
        %v830 = vtanh.pop %v574
        %v831 = vtanh.pop %v575
        %v832 = vtanh.pop %v576
        %v833 = vtanh.pop %v577
        %v834 = vtanh.pop %v578
        %v835 = vtanh.pop %v579
        %v836 = vtanh.pop %v580
        %v837 = vtanh.pop %v581
        %v838 = vtanh.pop %v582
        %v839 = vtanh.pop %v583
        %v840 = vtanh.pop %v584
        %v841 = vtanh.pop %v585
        %v842 = vtanh.pop %v586
        %v843 = vtanh.pop %v587
        %v844 = vtanh.pop %v588
        %v845 = vtanh.pop %v589
        %v846 = vtanh.pop %v590
        %v847 = vtanh.pop %v591
        %v848 = vtanh.pop %v592
        %v849 = vtanh.pop %v593
        %v850 = vtanh.pop %v594
        %v851 = vtanh.pop %v595
        %v852 = vtanh.pop %v596
        %v853 = vtanh.pop %v597
        %v854 = vtanh.pop %v598
        %v855 = vtanh.pop %v599
        %v856 = vtanh.pop %v600
        %v857 = vtanh.pop %v601
        %v858 = vtanh.pop %v602
        %v859 = vtanh.pop %v603
        %v860 = vtanh.pop %v604
        %v861 = vtanh.pop %v605
        %v862 = vtanh.pop %v606
        %v863 = vtanh.pop %v607
        %v864 = vtanh.pop %v608
        %v865 = vtanh.pop %v609
        %v866 = vtanh.pop %v610
        %v867 = vtanh.pop %v611
        %v868 = vtanh.pop %v612
        %v869 = vtanh.pop %v613
        %v870 = vtanh.pop %v614
        %v871 = vtanh.pop %v615
        %v872 = vtanh.pop %v616
        %v873 = vtanh.pop %v617
        %v874 = vtanh.pop %v618
        %v875 = vtanh.pop %v619
        %v876 = vtanh.pop %v620
        %v877 = vtanh.pop %v621
        %v878 = vtanh.pop %v622
        %v879 = vtanh.pop %v623
        %v880 = vtanh.pop %v624
        %v881 = vtanh.pop %v625
        %v882 = vtanh.pop %v626
        %v883 = vtanh.pop %v627
        %v884 = vtanh.pop %v628
        %v885 = vtanh.pop %v629
        %v886 = vtanh.pop %v630
        %v887 = vtanh.pop %v631
        %v888 = vtanh.pop %v632
        %v889 = vtanh.pop %v633
        %v890 = vtanh.pop %v634
        %v891 = vtanh.pop %v635
        %v892 = vtanh.pop %v636
        %v893 = vtanh.pop %v637
        %v894 = vtanh.pop %v638
        %v895 = vtanh.pop %v639
        %v896 = vtanh.pop %v640
        %v897 = vtanh.pop %v641
        %v898 = vtanh.pop %v642
        %v899 = vtanh.pop %v643
        %v900 = vtanh.pop %v644
        %v901 = vtanh.pop %v645
        %v902 = vtanh.pop %v646
        %v903 = vtanh.pop %v647
        %v904 = vtanh.pop %v648
        %v905 = vtanh.pop %v649
        %v906 = vmul.f32 %v650, 0.5
        %v907 = vmul.f32 %v651, 0.5
        %v908 = vmul.f32 %v652, 0.5
        %v909 = vmul.f32 %v653, 0.5
        %v910 = vmul.f32 %v654, 0.5
        %v911 = vmul.f32 %v655, 0.5
        %v912 = vmul.f32 %v656, 0.5
        %v913 = vmul.f32 %v657, 0.5
        %v914 = vmul.f32 %v658, 0.5
        %v915 = vmul.f32 %v659, 0.5
        %v916 = vmul.f32 %v660, 0.5
        %v917 = vmul.f32 %v661, 0.5
        %v918 = vmul.f32 %v662, 0.5
        %v919 = vmul.f32 %v663, 0.5
        %v920 = vmul.f32 %v664, 0.5
        %v921 = vmul.f32 %v665, 0.5
        %v922 = vmul.f32 %v666, 0.5
        %v923 = vmul.f32 %v667, 0.5
        %v924 = vmul.f32 %v668, 0.5
        %v925 = vmul.f32 %v669, 0.5
        %v926 = vmul.f32 %v670, 0.5
        %v927 = vmul.f32 %v671, 0.5
        %v928 = vmul.f32 %v672, 0.5
        %v929 = vmul.f32 %v673, 0.5
        %v930 = vmul.f32 %v674, 0.5
        %v931 = vmul.f32 %v675, 0.5
        %v932 = vmul.f32 %v676, 0.5
        %v933 = vmul.f32 %v677, 0.5
        %v934 = vmul.f32 %v678, 0.5
        %v935 = vmul.f32 %v679, 0.5
        %v936 = vmul.f32 %v680, 0.5
        %v937 = vmul.f32 %v681, 0.5
        %v938 = vmul.f32 %v682, 0.5
        %v939 = vmul.f32 %v683, 0.5
        %v940 = vmul.f32 %v684, 0.5
        %v941 = vmul.f32 %v685, 0.5
        %v942 = vmul.f32 %v686, 0.5
        %v943 = vmul.f32 %v687, 0.5
        %v944 = vmul.f32 %v688, 0.5
        %v945 = vmul.f32 %v689, 0.5
        %v946 = vmul.f32 %v690, 0.5
        %v947 = vmul.f32 %v691, 0.5
        %v948 = vmul.f32 %v692, 0.5
        %v949 = vmul.f32 %v693, 0.5
        %v950 = vmul.f32 %v694, 0.5
        %v951 = vmul.f32 %v695, 0.5
        %v952 = vmul.f32 %v696, 0.5
        %v953 = vmul.f32 %v697, 0.5
        %v954 = vmul.f32 %v698, 0.5
        %v955 = vmul.f32 %v699, 0.5
        %v956 = vmul.f32 %v700, 0.5
        %v957 = vmul.f32 %v701, 0.5
        %v958 = vmul.f32 %v702, 0.5
        %v959 = vmul.f32 %v703, 0.5
        %v960 = vmul.f32 %v704, 0.5
        %v961 = vmul.f32 %v705, 0.5
        %v962 = vmul.f32 %v706, 0.5
        %v963 = vmul.f32 %v707, 0.5
        %v964 = vmul.f32 %v708, 0.5
        %v965 = vmul.f32 %v709, 0.5
        %v966 = vmul.f32 %v710, 0.5
        %v967 = vmul.f32 %v711, 0.5
        %v968 = vmul.f32 %v712, 0.5
        %v969 = vmul.f32 %v713, 0.5
        %v970 = vmul.f32 %v714, 0.5
        %v971 = vmul.f32 %v715, 0.5
        %v972 = vmul.f32 %v716, 0.5
        %v973 = vmul.f32 %v717, 0.5
        %v974 = vmul.f32 %v718, 0.5
        %v975 = vmul.f32 %v719, 0.5
        %v976 = vmul.f32 %v720, 0.5
        %v977 = vmul.f32 %v721, 0.5
        %v978 = vmul.f32 %v722, 0.5
        %v979 = vmul.f32 %v723, 0.5
        %v980 = vmul.f32 %v724, 0.5
        %v981 = vmul.f32 %v725, 0.5
        %v982 = vmul.f32 %v726, 0.5
        %v983 = vmul.f32 %v727, 0.5
        %v984 = vmul.f32 %v728, 0.5
        %v985 = vmul.f32 %v729, 0.5
        %v986 = vmul.f32 %v730, 0.5
        %v987 = vmul.f32 %v731, 0.5
        %v988 = vmul.f32 %v732, 0.5
        %v989 = vmul.f32 %v733, 0.5
        %v990 = vmul.f32 %v734, 0.5
        %v991 = vmul.f32 %v735, 0.5
        %v992 = vmul.f32 %v736, 0.5
        %v993 = vmul.f32 %v737, 0.5
        %v994 = vmul.f32 %v738, 0.5
        %v995 = vmul.f32 %v739, 0.5
        %v996 = vmul.f32 %v740, 0.5
        %v997 = vmul.f32 %v741, 0.5
        %v998 = vmul.f32 %v742, 0.5
        %v999 = vmul.f32 %v743, 0.5
        %v1000 = vmul.f32 %v744, 0.5
        %v1001 = vmul.f32 %v745, 0.5
        %v1002 = vmul.f32 %v746, 0.5
        %v1003 = vmul.f32 %v747, 0.5
        %v1004 = vmul.f32 %v748, 0.5
        %v1005 = vmul.f32 %v749, 0.5
        %v1006 = vmul.f32 %v750, 0.5
        %v1007 = vmul.f32 %v751, 0.5
        %v1008 = vmul.f32 %v752, 0.5
        %v1009 = vmul.f32 %v753, 0.5
        %v1010 = vmul.f32 %v754, 0.5
        %v1011 = vmul.f32 %v755, 0.5
        %v1012 = vmul.f32 %v756, 0.5
        %v1013 = vmul.f32 %v757, 0.5
        %v1014 = vmul.f32 %v758, 0.5
        %v1015 = vmul.f32 %v759, 0.5
        %v1016 = vmul.f32 %v760, 0.5
        %v1017 = vmul.f32 %v761, 0.5
        %v1018 = vmul.f32 %v762, 0.5
        %v1019 = vmul.f32 %v763, 0.5
        %v1020 = vmul.f32 %v764, 0.5
        %v1021 = vmul.f32 %v765, 0.5
        %v1022 = vmul.f32 %v766, 0.5
        %v1023 = vmul.f32 %v767, 0.5
        %v1024 = vmul.f32 %v768, 0.5
        %v1025 = vmul.f32 %v769, 0.5
        %v1026 = vmul.f32 %v770, 0.5
        %v1027 = vmul.f32 %v771, 0.5
        %v1028 = vmul.f32 %v772, 0.5
        %v1029 = vmul.f32 %v773, 0.5
        %v1030 = vmul.f32 %v774, 0.5
        %v1031 = vmul.f32 %v775, 0.5
        %v1032 = vmul.f32 %v776, 0.5
        %v1033 = vmul.f32 %v777, 0.5
        %v1034 = vmul.f32 %v778, 0.5
        %v1035 = vmul.f32 %v779, 0.5
        %v1036 = vmul.f32 %v780, 0.5
        %v1037 = vmul.f32 %v781, 0.5
        %v1038 = vmul.f32 %v782, 0.5
        %v1039 = vmul.f32 %v783, 0.5
        %v1040 = vmul.f32 %v784, 0.5
        %v1041 = vmul.f32 %v785, 0.5
        %v1042 = vmul.f32 %v786, 0.5
        %v1043 = vmul.f32 %v787, 0.5
        %v1044 = vmul.f32 %v788, 0.5
        %v1045 = vmul.f32 %v789, 0.5
        %v1046 = vmul.f32 %v790, 0.5
        %v1047 = vmul.f32 %v791, 0.5
        %v1048 = vmul.f32 %v792, 0.5
        %v1049 = vmul.f32 %v793, 0.5
        %v1050 = vmul.f32 %v794, 0.5
        %v1051 = vmul.f32 %v795, 0.5
        %v1052 = vmul.f32 %v796, 0.5
        %v1053 = vmul.f32 %v797, 0.5
        %v1054 = vmul.f32 %v798, 0.5
        %v1055 = vmul.f32 %v799, 0.5
        %v1056 = vmul.f32 %v800, 0.5
        %v1057 = vmul.f32 %v801, 0.5
        %v1058 = vmul.f32 %v802, 0.5
        %v1059 = vmul.f32 %v803, 0.5
        %v1060 = vmul.f32 %v804, 0.5
        %v1061 = vmul.f32 %v805, 0.5
        %v1062 = vmul.f32 %v806, 0.5
        %v1063 = vmul.f32 %v807, 0.5
        %v1064 = vmul.f32 %v808, 0.5
        %v1065 = vmul.f32 %v809, 0.5
        %v1066 = vmul.f32 %v810, 0.5
        %v1067 = vmul.f32 %v811, 0.5
        %v1068 = vmul.f32 %v812, 0.5
        %v1069 = vmul.f32 %v813, 0.5
        %v1070 = vmul.f32 %v814, 0.5
        %v1071 = vmul.f32 %v815, 0.5
        %v1072 = vmul.f32 %v816, 0.5
        %v1073 = vmul.f32 %v817, 0.5
        %v1074 = vmul.f32 %v818, 0.5
        %v1075 = vmul.f32 %v819, 0.5
        %v1076 = vmul.f32 %v820, 0.5
        %v1077 = vmul.f32 %v821, 0.5
        %v1078 = vmul.f32 %v822, 0.5
        %v1079 = vmul.f32 %v823, 0.5
        %v1080 = vmul.f32 %v824, 0.5
        %v1081 = vmul.f32 %v825, 0.5
        %v1082 = vmul.f32 %v826, 0.5
        %v1083 = vmul.f32 %v827, 0.5
        %v1084 = vmul.f32 %v828, 0.5
        %v1085 = vmul.f32 %v829, 0.5
        %v1086 = vmul.f32 %v830, 0.5
        %v1087 = vmul.f32 %v831, 0.5
        %v1088 = vmul.f32 %v832, 0.5
        %v1089 = vmul.f32 %v833, 0.5
        %v1090 = vmul.f32 %v834, 0.5
        %v1091 = vmul.f32 %v835, 0.5
        %v1092 = vmul.f32 %v836, 0.5
        %v1093 = vmul.f32 %v837, 0.5
        %v1094 = vmul.f32 %v838, 0.5
        %v1095 = vmul.f32 %v839, 0.5
        %v1096 = vmul.f32 %v840, 0.5
        %v1097 = vmul.f32 %v841, 0.5
        %v1098 = vmul.f32 %v842, 0.5
        %v1099 = vmul.f32 %v843, 0.5
        %v1100 = vmul.f32 %v844, 0.5
        %v1101 = vmul.f32 %v845, 0.5
        %v1102 = vmul.f32 %v846, 0.5
        %v1103 = vmul.f32 %v847, 0.5
        %v1104 = vmul.f32 %v848, 0.5
        %v1105 = vmul.f32 %v849, 0.5
        %v1106 = vmul.f32 %v850, 0.5
        %v1107 = vmul.f32 %v851, 0.5
        %v1108 = vmul.f32 %v852, 0.5
        %v1109 = vmul.f32 %v853, 0.5
        %v1110 = vmul.f32 %v854, 0.5
        %v1111 = vmul.f32 %v855, 0.5
        %v1112 = vmul.f32 %v856, 0.5
        %v1113 = vmul.f32 %v857, 0.5
        %v1114 = vmul.f32 %v858, 0.5
        %v1115 = vmul.f32 %v859, 0.5
        %v1116 = vmul.f32 %v860, 0.5
        %v1117 = vmul.f32 %v861, 0.5
        %v1118 = vmul.f32 %v862, 0.5
        %v1119 = vmul.f32 %v863, 0.5
        %v1120 = vmul.f32 %v864, 0.5
        %v1121 = vmul.f32 %v865, 0.5
        %v1122 = vmul.f32 %v866, 0.5
        %v1123 = vmul.f32 %v867, 0.5
        %v1124 = vmul.f32 %v868, 0.5
        %v1125 = vmul.f32 %v869, 0.5
        %v1126 = vmul.f32 %v870, 0.5
        %v1127 = vmul.f32 %v871, 0.5
        %v1128 = vmul.f32 %v872, 0.5
        %v1129 = vmul.f32 %v873, 0.5
        %v1130 = vmul.f32 %v874, 0.5
        %v1131 = vmul.f32 %v875, 0.5
        %v1132 = vmul.f32 %v876, 0.5
        %v1133 = vmul.f32 %v877, 0.5
        %v1134 = vmul.f32 %v878, 0.5
        %v1135 = vmul.f32 %v879, 0.5
        %v1136 = vmul.f32 %v880, 0.5
        %v1137 = vmul.f32 %v881, 0.5
        %v1138 = vmul.f32 %v882, 0.5
        %v1139 = vmul.f32 %v883, 0.5
        %v1140 = vmul.f32 %v884, 0.5
        %v1141 = vmul.f32 %v885, 0.5
        %v1142 = vmul.f32 %v886, 0.5
        %v1143 = vmul.f32 %v887, 0.5
        %v1144 = vmul.f32 %v888, 0.5
        %v1145 = vmul.f32 %v889, 0.5
        %v1146 = vmul.f32 %v890, 0.5
        %v1147 = vmul.f32 %v891, 0.5
        %v1148 = vmul.f32 %v892, 0.5
        %v1149 = vmul.f32 %v893, 0.5
        %v1150 = vmul.f32 %v894, 0.5
        %v1151 = vmul.f32 %v895, 0.5
        %v1152 = vmul.f32 %v896, 0.5
        %v1153 = vmul.f32 %v897, 0.5
        %v1154 = vmul.f32 %v898, 0.5
        %v1155 = vmul.f32 %v899, 0.5
        %v1156 = vmul.f32 %v900, 0.5
        %v1157 = vmul.f32 %v901, 0.5
        %v1158 = vmul.f32 %v902, 0.5
        %v1159 = vmul.f32 %v903, 0.5
        %v1160 = vmul.f32 %v904, 0.5
        %v1161 = vmul.f32 %v905, 0.5
        %v1162 = vadd.f32 %v906, 0.5
        %v1163 = vadd.f32 %v907, 0.5
        %v1164 = vadd.f32 %v908, 0.5
        %v1165 = vadd.f32 %v909, 0.5
        %v1166 = vadd.f32 %v910, 0.5
        %v1167 = vadd.f32 %v911, 0.5
        %v1168 = vadd.f32 %v912, 0.5
        %v1169 = vadd.f32 %v913, 0.5
        %v1170 = vadd.f32 %v914, 0.5
        %v1171 = vadd.f32 %v915, 0.5
        %v1172 = vadd.f32 %v916, 0.5
        %v1173 = vadd.f32 %v917, 0.5
        %v1174 = vadd.f32 %v918, 0.5
        %v1175 = vadd.f32 %v919, 0.5
        %v1176 = vadd.f32 %v920, 0.5
        %v1177 = vadd.f32 %v921, 0.5
        %v1178 = vadd.f32 %v922, 0.5
        %v1179 = vadd.f32 %v923, 0.5
        %v1180 = vadd.f32 %v924, 0.5
        %v1181 = vadd.f32 %v925, 0.5
        %v1182 = vadd.f32 %v926, 0.5
        %v1183 = vadd.f32 %v927, 0.5
        %v1184 = vadd.f32 %v928, 0.5
        %v1185 = vadd.f32 %v929, 0.5
        %v1186 = vadd.f32 %v930, 0.5
        %v1187 = vadd.f32 %v931, 0.5
        %v1188 = vadd.f32 %v932, 0.5
        %v1189 = vadd.f32 %v933, 0.5
        %v1190 = vadd.f32 %v934, 0.5
        %v1191 = vadd.f32 %v935, 0.5
        %v1192 = vadd.f32 %v936, 0.5
        %v1193 = vadd.f32 %v937, 0.5
        %v1194 = vadd.f32 %v938, 0.5
        %v1195 = vadd.f32 %v939, 0.5
        %v1196 = vadd.f32 %v940, 0.5
        %v1197 = vadd.f32 %v941, 0.5
        %v1198 = vadd.f32 %v942, 0.5
        %v1199 = vadd.f32 %v943, 0.5
        %v1200 = vadd.f32 %v944, 0.5
        %v1201 = vadd.f32 %v945, 0.5
        %v1202 = vadd.f32 %v946, 0.5
        %v1203 = vadd.f32 %v947, 0.5
        %v1204 = vadd.f32 %v948, 0.5
        %v1205 = vadd.f32 %v949, 0.5
        %v1206 = vadd.f32 %v950, 0.5
        %v1207 = vadd.f32 %v951, 0.5
        %v1208 = vadd.f32 %v952, 0.5
        %v1209 = vadd.f32 %v953, 0.5
        %v1210 = vadd.f32 %v954, 0.5
        %v1211 = vadd.f32 %v955, 0.5
        %v1212 = vadd.f32 %v956, 0.5
        %v1213 = vadd.f32 %v957, 0.5
        %v1214 = vadd.f32 %v958, 0.5
        %v1215 = vadd.f32 %v959, 0.5
        %v1216 = vadd.f32 %v960, 0.5
        %v1217 = vadd.f32 %v961, 0.5
        %v1218 = vadd.f32 %v962, 0.5
        %v1219 = vadd.f32 %v963, 0.5
        %v1220 = vadd.f32 %v964, 0.5
        %v1221 = vadd.f32 %v965, 0.5
        %v1222 = vadd.f32 %v966, 0.5
        %v1223 = vadd.f32 %v967, 0.5
        %v1224 = vadd.f32 %v968, 0.5
        %v1225 = vadd.f32 %v969, 0.5
        %v1226 = vadd.f32 %v970, 0.5
        %v1227 = vadd.f32 %v971, 0.5
        %v1228 = vadd.f32 %v972, 0.5
        %v1229 = vadd.f32 %v973, 0.5
        %v1230 = vadd.f32 %v974, 0.5
        %v1231 = vadd.f32 %v975, 0.5
        %v1232 = vadd.f32 %v976, 0.5
        %v1233 = vadd.f32 %v977, 0.5
        %v1234 = vadd.f32 %v978, 0.5
        %v1235 = vadd.f32 %v979, 0.5
        %v1236 = vadd.f32 %v980, 0.5
        %v1237 = vadd.f32 %v981, 0.5
        %v1238 = vadd.f32 %v982, 0.5
        %v1239 = vadd.f32 %v983, 0.5
        %v1240 = vadd.f32 %v984, 0.5
        %v1241 = vadd.f32 %v985, 0.5
        %v1242 = vadd.f32 %v986, 0.5
        %v1243 = vadd.f32 %v987, 0.5
        %v1244 = vadd.f32 %v988, 0.5
        %v1245 = vadd.f32 %v989, 0.5
        %v1246 = vadd.f32 %v990, 0.5
        %v1247 = vadd.f32 %v991, 0.5
        %v1248 = vadd.f32 %v992, 0.5
        %v1249 = vadd.f32 %v993, 0.5
        %v1250 = vadd.f32 %v994, 0.5
        %v1251 = vadd.f32 %v995, 0.5
        %v1252 = vadd.f32 %v996, 0.5
        %v1253 = vadd.f32 %v997, 0.5
        %v1254 = vadd.f32 %v998, 0.5
        %v1255 = vadd.f32 %v999, 0.5
        %v1256 = vadd.f32 %v1000, 0.5
        %v1257 = vadd.f32 %v1001, 0.5
        %v1258 = vadd.f32 %v1002, 0.5
        %v1259 = vadd.f32 %v1003, 0.5
        %v1260 = vadd.f32 %v1004, 0.5
        %v1261 = vadd.f32 %v1005, 0.5
        %v1262 = vadd.f32 %v1006, 0.5
        %v1263 = vadd.f32 %v1007, 0.5
        %v1264 = vadd.f32 %v1008, 0.5
        %v1265 = vadd.f32 %v1009, 0.5
        %v1266 = vadd.f32 %v1010, 0.5
        %v1267 = vadd.f32 %v1011, 0.5
        %v1268 = vadd.f32 %v1012, 0.5
        %v1269 = vadd.f32 %v1013, 0.5
        %v1270 = vadd.f32 %v1014, 0.5
        %v1271 = vadd.f32 %v1015, 0.5
        %v1272 = vadd.f32 %v1016, 0.5
        %v1273 = vadd.f32 %v1017, 0.5
        %v1274 = vadd.f32 %v1018, 0.5
        %v1275 = vadd.f32 %v1019, 0.5
        %v1276 = vadd.f32 %v1020, 0.5
        %v1277 = vadd.f32 %v1021, 0.5
        %v1278 = vadd.f32 %v1022, 0.5
        %v1279 = vadd.f32 %v1023, 0.5
        %v1280 = vadd.f32 %v1024, 0.5
        %v1281 = vadd.f32 %v1025, 0.5
        %v1282 = vadd.f32 %v1026, 0.5
        %v1283 = vadd.f32 %v1027, 0.5
        %v1284 = vadd.f32 %v1028, 0.5
        %v1285 = vadd.f32 %v1029, 0.5
        %v1286 = vadd.f32 %v1030, 0.5
        %v1287 = vadd.f32 %v1031, 0.5
        %v1288 = vadd.f32 %v1032, 0.5
        %v1289 = vadd.f32 %v1033, 0.5
        %v1290 = vadd.f32 %v1034, 0.5
        %v1291 = vadd.f32 %v1035, 0.5
        %v1292 = vadd.f32 %v1036, 0.5
        %v1293 = vadd.f32 %v1037, 0.5
        %v1294 = vadd.f32 %v1038, 0.5
        %v1295 = vadd.f32 %v1039, 0.5
        %v1296 = vadd.f32 %v1040, 0.5
        %v1297 = vadd.f32 %v1041, 0.5
        %v1298 = vadd.f32 %v1042, 0.5
        %v1299 = vadd.f32 %v1043, 0.5
        %v1300 = vadd.f32 %v1044, 0.5
        %v1301 = vadd.f32 %v1045, 0.5
        %v1302 = vadd.f32 %v1046, 0.5
        %v1303 = vadd.f32 %v1047, 0.5
        %v1304 = vadd.f32 %v1048, 0.5
        %v1305 = vadd.f32 %v1049, 0.5
        %v1306 = vadd.f32 %v1050, 0.5
        %v1307 = vadd.f32 %v1051, 0.5
        %v1308 = vadd.f32 %v1052, 0.5
        %v1309 = vadd.f32 %v1053, 0.5
        %v1310 = vadd.f32 %v1054, 0.5
        %v1311 = vadd.f32 %v1055, 0.5
        %v1312 = vadd.f32 %v1056, 0.5
        %v1313 = vadd.f32 %v1057, 0.5
        %v1314 = vadd.f32 %v1058, 0.5
        %v1315 = vadd.f32 %v1059, 0.5
        %v1316 = vadd.f32 %v1060, 0.5
        %v1317 = vadd.f32 %v1061, 0.5
        %v1318 = vadd.f32 %v1062, 0.5
        %v1319 = vadd.f32 %v1063, 0.5
        %v1320 = vadd.f32 %v1064, 0.5
        %v1321 = vadd.f32 %v1065, 0.5
        %v1322 = vadd.f32 %v1066, 0.5
        %v1323 = vadd.f32 %v1067, 0.5
        %v1324 = vadd.f32 %v1068, 0.5
        %v1325 = vadd.f32 %v1069, 0.5
        %v1326 = vadd.f32 %v1070, 0.5
        %v1327 = vadd.f32 %v1071, 0.5
        %v1328 = vadd.f32 %v1072, 0.5
        %v1329 = vadd.f32 %v1073, 0.5
        %v1330 = vadd.f32 %v1074, 0.5
        %v1331 = vadd.f32 %v1075, 0.5
        %v1332 = vadd.f32 %v1076, 0.5
        %v1333 = vadd.f32 %v1077, 0.5
        %v1334 = vadd.f32 %v1078, 0.5
        %v1335 = vadd.f32 %v1079, 0.5
        %v1336 = vadd.f32 %v1080, 0.5
        %v1337 = vadd.f32 %v1081, 0.5
        %v1338 = vadd.f32 %v1082, 0.5
        %v1339 = vadd.f32 %v1083, 0.5
        %v1340 = vadd.f32 %v1084, 0.5
        %v1341 = vadd.f32 %v1085, 0.5
        %v1342 = vadd.f32 %v1086, 0.5
        %v1343 = vadd.f32 %v1087, 0.5
        %v1344 = vadd.f32 %v1088, 0.5
        %v1345 = vadd.f32 %v1089, 0.5
        %v1346 = vadd.f32 %v1090, 0.5
        %v1347 = vadd.f32 %v1091, 0.5
        %v1348 = vadd.f32 %v1092, 0.5
        %v1349 = vadd.f32 %v1093, 0.5
        %v1350 = vadd.f32 %v1094, 0.5
        %v1351 = vadd.f32 %v1095, 0.5
        %v1352 = vadd.f32 %v1096, 0.5
        %v1353 = vadd.f32 %v1097, 0.5
        %v1354 = vadd.f32 %v1098, 0.5
        %v1355 = vadd.f32 %v1099, 0.5
        %v1356 = vadd.f32 %v1100, 0.5
        %v1357 = vadd.f32 %v1101, 0.5
        %v1358 = vadd.f32 %v1102, 0.5
        %v1359 = vadd.f32 %v1103, 0.5
        %v1360 = vadd.f32 %v1104, 0.5
        %v1361 = vadd.f32 %v1105, 0.5
        %v1362 = vadd.f32 %v1106, 0.5
        %v1363 = vadd.f32 %v1107, 0.5
        %v1364 = vadd.f32 %v1108, 0.5
        %v1365 = vadd.f32 %v1109, 0.5
        %v1366 = vadd.f32 %v1110, 0.5
        %v1367 = vadd.f32 %v1111, 0.5
        %v1368 = vadd.f32 %v1112, 0.5
        %v1369 = vadd.f32 %v1113, 0.5
        %v1370 = vadd.f32 %v1114, 0.5
        %v1371 = vadd.f32 %v1115, 0.5
        %v1372 = vadd.f32 %v1116, 0.5
        %v1373 = vadd.f32 %v1117, 0.5
        %v1374 = vadd.f32 %v1118, 0.5
        %v1375 = vadd.f32 %v1119, 0.5
        %v1376 = vadd.f32 %v1120, 0.5
        %v1377 = vadd.f32 %v1121, 0.5
        %v1378 = vadd.f32 %v1122, 0.5
        %v1379 = vadd.f32 %v1123, 0.5
        %v1380 = vadd.f32 %v1124, 0.5
        %v1381 = vadd.f32 %v1125, 0.5
        %v1382 = vadd.f32 %v1126, 0.5
        %v1383 = vadd.f32 %v1127, 0.5
        %v1384 = vadd.f32 %v1128, 0.5
        %v1385 = vadd.f32 %v1129, 0.5
        %v1386 = vadd.f32 %v1130, 0.5
        %v1387 = vadd.f32 %v1131, 0.5
        %v1388 = vadd.f32 %v1132, 0.5
        %v1389 = vadd.f32 %v1133, 0.5
        %v1390 = vadd.f32 %v1134, 0.5
        %v1391 = vadd.f32 %v1135, 0.5
        %v1392 = vadd.f32 %v1136, 0.5
        %v1393 = vadd.f32 %v1137, 0.5
        %v1394 = vadd.f32 %v1138, 0.5
        %v1395 = vadd.f32 %v1139, 0.5
        %v1396 = vadd.f32 %v1140, 0.5
        %v1397 = vadd.f32 %v1141, 0.5
        %v1398 = vadd.f32 %v1142, 0.5
        %v1399 = vadd.f32 %v1143, 0.5
        %v1400 = vadd.f32 %v1144, 0.5
        %v1401 = vadd.f32 %v1145, 0.5
        %v1402 = vadd.f32 %v1146, 0.5
        %v1403 = vadd.f32 %v1147, 0.5
        %v1404 = vadd.f32 %v1148, 0.5
        %v1405 = vadd.f32 %v1149, 0.5
        %v1406 = vadd.f32 %v1150, 0.5
        %v1407 = vadd.f32 %v1151, 0.5
        %v1408 = vadd.f32 %v1152, 0.5
        %v1409 = vadd.f32 %v1153, 0.5
        %v1410 = vadd.f32 %v1154, 0.5
        %v1411 = vadd.f32 %v1155, 0.5
        %v1412 = vadd.f32 %v1156, 0.5
        %v1413 = vadd.f32 %v1157, 0.5
        %v1414 = vadd.f32 %v1158, 0.5
        %v1415 = vadd.f32 %v1159, 0.5
        %v1416 = vadd.f32 %v1160, 0.5
        %v1417 = vadd.f32 %v1161, 0.5
        %1418 = vst [vmem:[%s135] sm:$0xff] %v1162
        %1419 = vst [vmem:[%s135 + $0x8] sm:$0xff] %v1163
        %1420 = vst [vmem:[%s135 + $0x10] sm:$0xff] %v1164
        %1421 = vst [vmem:[%s135 + $0x18] sm:$0xff] %v1165
        %1422 = vst [vmem:[%s135 + $0x20] sm:$0xff] %v1166
        %1423 = vst [vmem:[%s135 + $0x28] sm:$0xff] %v1167
        %1424 = vst [vmem:[%s135 + $0x30] sm:$0xff] %v1168
        %1425 = vst [vmem:[%s135 + $0x38] sm:$0xff] %v1169
        %1426 = vst [vmem:[%s135 + $0x40] sm:$0xff] %v1170
        %1427 = vst [vmem:[%s135 + $0x48] sm:$0xff] %v1171
        %1428 = vst [vmem:[%s135 + $0x50] sm:$0xff] %v1172
        %1429 = vst [vmem:[%s135 + $0x58] sm:$0xff] %v1173
        %1430 = vst [vmem:[%s135 + $0x60] sm:$0xff] %v1174
        %1431 = vst [vmem:[%s135 + $0x68] sm:$0xff] %v1175
        %1432 = vst [vmem:[%s135 + $0x70] sm:$0xff] %v1176
        %1433 = vst [vmem:[%s135 + $0x78] sm:$0xff] %v1177
        %1434 = vst [vmem:[%s135 + $0x80] sm:$0xff] %v1178
        %1435 = vst [vmem:[%s135 + $0x88] sm:$0xff] %v1179
        %1436 = vst [vmem:[%s135 + $0x90] sm:$0xff] %v1180
        %1437 = vst [vmem:[%s135 + $0x98] sm:$0xff] %v1181
        %1438 = vst [vmem:[%s135 + $0xa0] sm:$0xff] %v1182
        %1439 = vst [vmem:[%s135 + $0xa8] sm:$0xff] %v1183
        %1440 = vst [vmem:[%s135 + $0xb0] sm:$0xff] %v1184
        %1441 = vst [vmem:[%s135 + $0xb8] sm:$0xff] %v1185
        %1442 = vst [vmem:[%s135 + $0xc0] sm:$0xff] %v1186
        %1443 = vst [vmem:[%s135 + $0xc8] sm:$0xff] %v1187
        %1444 = vst [vmem:[%s135 + $0xd0] sm:$0xff] %v1188
        %1445 = vst [vmem:[%s135 + $0xd8] sm:$0xff] %v1189
        %1446 = vst [vmem:[%s135 + $0xe0] sm:$0xff] %v1190
        %1447 = vst [vmem:[%s135 + $0xe8] sm:$0xff] %v1191
        %1448 = vst [vmem:[%s135 + $0xf0] sm:$0xff] %v1192
        %1449 = vst [vmem:[%s135 + $0xf8] sm:$0xff] %v1193
        %1450 = vst [vmem:[%s135 + $0x100] sm:$0xff] %v1194
        %1451 = vst [vmem:[%s135 + $0x108] sm:$0xff] %v1195
        %1452 = vst [vmem:[%s135 + $0x110] sm:$0xff] %v1196
        %1453 = vst [vmem:[%s135 + $0x118] sm:$0xff] %v1197
        %1454 = vst [vmem:[%s135 + $0x120] sm:$0xff] %v1198
        %1455 = vst [vmem:[%s135 + $0x128] sm:$0xff] %v1199
        %1456 = vst [vmem:[%s135 + $0x130] sm:$0xff] %v1200
        %1457 = vst [vmem:[%s135 + $0x138] sm:$0xff] %v1201
        %1458 = vst [vmem:[%s135 + $0x140] sm:$0xff] %v1202
        %1459 = vst [vmem:[%s135 + $0x148] sm:$0xff] %v1203
        %1460 = vst [vmem:[%s135 + $0x150] sm:$0xff] %v1204
        %1461 = vst [vmem:[%s135 + $0x158] sm:$0xff] %v1205
        %1462 = vst [vmem:[%s135 + $0x160] sm:$0xff] %v1206
        %1463 = vst [vmem:[%s135 + $0x168] sm:$0xff] %v1207
        %1464 = vst [vmem:[%s135 + $0x170] sm:$0xff] %v1208
        %1465 = vst [vmem:[%s135 + $0x178] sm:$0xff] %v1209
        %1466 = vst [vmem:[%s135 + $0x180] sm:$0xff] %v1210
        %1467 = vst [vmem:[%s135 + $0x188] sm:$0xff] %v1211
        %1468 = vst [vmem:[%s135 + $0x190] sm:$0xff] %v1212
        %1469 = vst [vmem:[%s135 + $0x198] sm:$0xff] %v1213
        %1470 = vst [vmem:[%s135 + $0x1a0] sm:$0xff] %v1214
        %1471 = vst [vmem:[%s135 + $0x1a8] sm:$0xff] %v1215
        %1472 = vst [vmem:[%s135 + $0x1b0] sm:$0xff] %v1216
        %1473 = vst [vmem:[%s135 + $0x1b8] sm:$0xff] %v1217
        %1474 = vst [vmem:[%s135 + $0x1c0] sm:$0xff] %v1218
        %1475 = vst [vmem:[%s135 + $0x1c8] sm:$0xff] %v1219
        %1476 = vst [vmem:[%s135 + $0x1d0] sm:$0xff] %v1220
        %1477 = vst [vmem:[%s135 + $0x1d8] sm:$0xff] %v1221
        %1478 = vst [vmem:[%s135 + $0x1e0] sm:$0xff] %v1222
        %1479 = vst [vmem:[%s135 + $0x1e8] sm:$0xff] %v1223
        %1480 = vst [vmem:[%s135 + $0x1f0] sm:$0xff] %v1224
        %1481 = vst [vmem:[%s135 + $0x1f8] sm:$0xff] %v1225
        %1482 = vst [vmem:[%s135 + $0x200] sm:$0xff] %v1226
        %1483 = vst [vmem:[%s135 + $0x208] sm:$0xff] %v1227
        %1484 = vst [vmem:[%s135 + $0x210] sm:$0xff] %v1228
        %1485 = vst [vmem:[%s135 + $0x218] sm:$0xff] %v1229
        %1486 = vst [vmem:[%s135 + $0x220] sm:$0xff] %v1230
        %1487 = vst [vmem:[%s135 + $0x228] sm:$0xff] %v1231
        %1488 = vst [vmem:[%s135 + $0x230] sm:$0xff] %v1232
        %1489 = vst [vmem:[%s135 + $0x238] sm:$0xff] %v1233
        %1490 = vst [vmem:[%s135 + $0x240] sm:$0xff] %v1234
        %1491 = vst [vmem:[%s135 + $0x248] sm:$0xff] %v1235
        %1492 = vst [vmem:[%s135 + $0x250] sm:$0xff] %v1236
        %1493 = vst [vmem:[%s135 + $0x258] sm:$0xff] %v1237
        %1494 = vst [vmem:[%s135 + $0x260] sm:$0xff] %v1238
        %1495 = vst [vmem:[%s135 + $0x268] sm:$0xff] %v1239
        %1496 = vst [vmem:[%s135 + $0x270] sm:$0xff] %v1240
        %1497 = vst [vmem:[%s135 + $0x278] sm:$0xff] %v1241
        %1498 = vst [vmem:[%s135 + $0x280] sm:$0xff] %v1242
        %1499 = vst [vmem:[%s135 + $0x288] sm:$0xff] %v1243
        %1500 = vst [vmem:[%s135 + $0x290] sm:$0xff] %v1244
        %1501 = vst [vmem:[%s135 + $0x298] sm:$0xff] %v1245
        %1502 = vst [vmem:[%s135 + $0x2a0] sm:$0xff] %v1246
        %1503 = vst [vmem:[%s135 + $0x2a8] sm:$0xff] %v1247
        %1504 = vst [vmem:[%s135 + $0x2b0] sm:$0xff] %v1248
        %1505 = vst [vmem:[%s135 + $0x2b8] sm:$0xff] %v1249
        %1506 = vst [vmem:[%s135 + $0x2c0] sm:$0xff] %v1250
        %1507 = vst [vmem:[%s135 + $0x2c8] sm:$0xff] %v1251
        %1508 = vst [vmem:[%s135 + $0x2d0] sm:$0xff] %v1252
        %1509 = vst [vmem:[%s135 + $0x2d8] sm:$0xff] %v1253
        %1510 = vst [vmem:[%s135 + $0x2e0] sm:$0xff] %v1254
        %1511 = vst [vmem:[%s135 + $0x2e8] sm:$0xff] %v1255
        %1512 = vst [vmem:[%s135 + $0x2f0] sm:$0xff] %v1256
        %1513 = vst [vmem:[%s135 + $0x2f8] sm:$0xff] %v1257
        %1514 = vst [vmem:[%s135 + $0x300] sm:$0xff] %v1258
        %1515 = vst [vmem:[%s135 + $0x308] sm:$0xff] %v1259
        %1516 = vst [vmem:[%s135 + $0x310] sm:$0xff] %v1260
        %1517 = vst [vmem:[%s135 + $0x318] sm:$0xff] %v1261
        %1518 = vst [vmem:[%s135 + $0x320] sm:$0xff] %v1262
        %1519 = vst [vmem:[%s135 + $0x328] sm:$0xff] %v1263
        %1520 = vst [vmem:[%s135 + $0x330] sm:$0xff] %v1264
        %1521 = vst [vmem:[%s135 + $0x338] sm:$0xff] %v1265
        %1522 = vst [vmem:[%s135 + $0x340] sm:$0xff] %v1266
        %1523 = vst [vmem:[%s135 + $0x348] sm:$0xff] %v1267
        %1524 = vst [vmem:[%s135 + $0x350] sm:$0xff] %v1268
        %1525 = vst [vmem:[%s135 + $0x358] sm:$0xff] %v1269
        %1526 = vst [vmem:[%s135 + $0x360] sm:$0xff] %v1270
        %1527 = vst [vmem:[%s135 + $0x368] sm:$0xff] %v1271
        %1528 = vst [vmem:[%s135 + $0x370] sm:$0xff] %v1272
        %1529 = vst [vmem:[%s135 + $0x378] sm:$0xff] %v1273
        %1530 = vst [vmem:[%s135 + $0x380] sm:$0xff] %v1274
        %1531 = vst [vmem:[%s135 + $0x388] sm:$0xff] %v1275
        %1532 = vst [vmem:[%s135 + $0x390] sm:$0xff] %v1276
        %1533 = vst [vmem:[%s135 + $0x398] sm:$0xff] %v1277
        %1534 = vst [vmem:[%s135 + $0x3a0] sm:$0xff] %v1278
        %1535 = vst [vmem:[%s135 + $0x3a8] sm:$0xff] %v1279
        %1536 = vst [vmem:[%s135 + $0x3b0] sm:$0xff] %v1280
        %1537 = vst [vmem:[%s135 + $0x3b8] sm:$0xff] %v1281
        %1538 = vst [vmem:[%s135 + $0x3c0] sm:$0xff] %v1282
        %1539 = vst [vmem:[%s135 + $0x3c8] sm:$0xff] %v1283
        %1540 = vst [vmem:[%s135 + $0x3d0] sm:$0xff] %v1284
        %1541 = vst [vmem:[%s135 + $0x3d8] sm:$0xff] %v1285
        %1542 = vst [vmem:[%s135 + $0x3e0] sm:$0xff] %v1286
        %1543 = vst [vmem:[%s135 + $0x3e8] sm:$0xff] %v1287
        %1544 = vst [vmem:[%s135 + $0x3f0] sm:$0xff] %v1288
        %1545 = vst [vmem:[%s135 + $0x3f8] sm:$0xff] %v1289
        %1546 = vst [vmem:[%s135 + $0x400] sm:$0xff] %v1290
        %1547 = vst [vmem:[%s135 + $0x408] sm:$0xff] %v1291
        %1548 = vst [vmem:[%s135 + $0x410] sm:$0xff] %v1292
        %1549 = vst [vmem:[%s135 + $0x418] sm:$0xff] %v1293
        %1550 = vst [vmem:[%s135 + $0x420] sm:$0xff] %v1294
        %1551 = vst [vmem:[%s135 + $0x428] sm:$0xff] %v1295
        %1552 = vst [vmem:[%s135 + $0x430] sm:$0xff] %v1296
        %1553 = vst [vmem:[%s135 + $0x438] sm:$0xff] %v1297
        %1554 = vst [vmem:[%s135 + $0x440] sm:$0xff] %v1298
        %1555 = vst [vmem:[%s135 + $0x448] sm:$0xff] %v1299
        %1556 = vst [vmem:[%s135 + $0x450] sm:$0xff] %v1300
        %1557 = vst [vmem:[%s135 + $0x458] sm:$0xff] %v1301
        %1558 = vst [vmem:[%s135 + $0x460] sm:$0xff] %v1302
        %1559 = vst [vmem:[%s135 + $0x468] sm:$0xff] %v1303
        %1560 = vst [vmem:[%s135 + $0x470] sm:$0xff] %v1304
        %1561 = vst [vmem:[%s135 + $0x478] sm:$0xff] %v1305
        %1562 = vst [vmem:[%s135 + $0x480] sm:$0xff] %v1306
        %1563 = vst [vmem:[%s135 + $0x488] sm:$0xff] %v1307
        %1564 = vst [vmem:[%s135 + $0x490] sm:$0xff] %v1308
        %1565 = vst [vmem:[%s135 + $0x498] sm:$0xff] %v1309
        %1566 = vst [vmem:[%s135 + $0x4a0] sm:$0xff] %v1310
        %1567 = vst [vmem:[%s135 + $0x4a8] sm:$0xff] %v1311
        %1568 = vst [vmem:[%s135 + $0x4b0] sm:$0xff] %v1312
        %1569 = vst [vmem:[%s135 + $0x4b8] sm:$0xff] %v1313
        %1570 = vst [vmem:[%s135 + $0x4c0] sm:$0xff] %v1314
        %1571 = vst [vmem:[%s135 + $0x4c8] sm:$0xff] %v1315
        %1572 = vst [vmem:[%s135 + $0x4d0] sm:$0xff] %v1316
        %1573 = vst [vmem:[%s135 + $0x4d8] sm:$0xff] %v1317
        %1574 = vst [vmem:[%s135 + $0x4e0] sm:$0xff] %v1318
        %1575 = vst [vmem:[%s135 + $0x4e8] sm:$0xff] %v1319
        %1576 = vst [vmem:[%s135 + $0x4f0] sm:$0xff] %v1320
        %1577 = vst [vmem:[%s135 + $0x4f8] sm:$0xff] %v1321
        %1578 = vst [vmem:[%s135 + $0x500] sm:$0xff] %v1322
        %1579 = vst [vmem:[%s135 + $0x508] sm:$0xff] %v1323
        %1580 = vst [vmem:[%s135 + $0x510] sm:$0xff] %v1324
        %1581 = vst [vmem:[%s135 + $0x518] sm:$0xff] %v1325
        %1582 = vst [vmem:[%s135 + $0x520] sm:$0xff] %v1326
        %1583 = vst [vmem:[%s135 + $0x528] sm:$0xff] %v1327
        %1584 = vst [vmem:[%s135 + $0x530] sm:$0xff] %v1328
        %1585 = vst [vmem:[%s135 + $0x538] sm:$0xff] %v1329
        %1586 = vst [vmem:[%s135 + $0x540] sm:$0xff] %v1330
        %1587 = vst [vmem:[%s135 + $0x548] sm:$0xff] %v1331
        %1588 = vst [vmem:[%s135 + $0x550] sm:$0xff] %v1332
        %1589 = vst [vmem:[%s135 + $0x558] sm:$0xff] %v1333
        %1590 = vst [vmem:[%s135 + $0x560] sm:$0xff] %v1334
        %1591 = vst [vmem:[%s135 + $0x568] sm:$0xff] %v1335
        %1592 = vst [vmem:[%s135 + $0x570] sm:$0xff] %v1336
        %1593 = vst [vmem:[%s135 + $0x578] sm:$0xff] %v1337
        %1594 = vst [vmem:[%s135 + $0x580] sm:$0xff] %v1338
        %1595 = vst [vmem:[%s135 + $0x588] sm:$0xff] %v1339
        %1596 = vst [vmem:[%s135 + $0x590] sm:$0xff] %v1340
        %1597 = vst [vmem:[%s135 + $0x598] sm:$0xff] %v1341
        %1598 = vst [vmem:[%s135 + $0x5a0] sm:$0xff] %v1342
        %1599 = vst [vmem:[%s135 + $0x5a8] sm:$0xff] %v1343
        %1600 = vst [vmem:[%s135 + $0x5b0] sm:$0xff] %v1344
        %1601 = vst [vmem:[%s135 + $0x5b8] sm:$0xff] %v1345
        %1602 = vst [vmem:[%s135 + $0x5c0] sm:$0xff] %v1346
        %1603 = vst [vmem:[%s135 + $0x5c8] sm:$0xff] %v1347
        %1604 = vst [vmem:[%s135 + $0x5d0] sm:$0xff] %v1348
        %1605 = vst [vmem:[%s135 + $0x5d8] sm:$0xff] %v1349
        %1606 = vst [vmem:[%s135 + $0x5e0] sm:$0xff] %v1350
        %1607 = vst [vmem:[%s135 + $0x5e8] sm:$0xff] %v1351
        %1608 = vst [vmem:[%s135 + $0x5f0] sm:$0xff] %v1352
        %1609 = vst [vmem:[%s135 + $0x5f8] sm:$0xff] %v1353
        %1610 = vst [vmem:[%s135 + $0x600] sm:$0xff] %v1354
        %1611 = vst [vmem:[%s135 + $0x608] sm:$0xff] %v1355
        %1612 = vst [vmem:[%s135 + $0x610] sm:$0xff] %v1356
        %1613 = vst [vmem:[%s135 + $0x618] sm:$0xff] %v1357
        %1614 = vst [vmem:[%s135 + $0x620] sm:$0xff] %v1358
        %1615 = vst [vmem:[%s135 + $0x628] sm:$0xff] %v1359
        %1616 = vst [vmem:[%s135 + $0x630] sm:$0xff] %v1360
        %1617 = vst [vmem:[%s135 + $0x638] sm:$0xff] %v1361
        %1618 = vst [vmem:[%s135 + $0x640] sm:$0xff] %v1362
        %1619 = vst [vmem:[%s135 + $0x648] sm:$0xff] %v1363
        %1620 = vst [vmem:[%s135 + $0x650] sm:$0xff] %v1364
        %1621 = vst [vmem:[%s135 + $0x658] sm:$0xff] %v1365
        %1622 = vst [vmem:[%s135 + $0x660] sm:$0xff] %v1366
        %1623 = vst [vmem:[%s135 + $0x668] sm:$0xff] %v1367
        %1624 = vst [vmem:[%s135 + $0x670] sm:$0xff] %v1368
        %1625 = vst [vmem:[%s135 + $0x678] sm:$0xff] %v1369
        %1626 = vst [vmem:[%s135 + $0x680] sm:$0xff] %v1370
        %1627 = vst [vmem:[%s135 + $0x688] sm:$0xff] %v1371
        %1628 = vst [vmem:[%s135 + $0x690] sm:$0xff] %v1372
        %1629 = vst [vmem:[%s135 + $0x698] sm:$0xff] %v1373
        %1630 = vst [vmem:[%s135 + $0x6a0] sm:$0xff] %v1374
        %1631 = vst [vmem:[%s135 + $0x6a8] sm:$0xff] %v1375
        %1632 = vst [vmem:[%s135 + $0x6b0] sm:$0xff] %v1376
        %1633 = vst [vmem:[%s135 + $0x6b8] sm:$0xff] %v1377
        %1634 = vst [vmem:[%s135 + $0x6c0] sm:$0xff] %v1378
        %1635 = vst [vmem:[%s135 + $0x6c8] sm:$0xff] %v1379
        %1636 = vst [vmem:[%s135 + $0x6d0] sm:$0xff] %v1380
        %1637 = vst [vmem:[%s135 + $0x6d8] sm:$0xff] %v1381
        %1638 = vst [vmem:[%s135 + $0x6e0] sm:$0xff] %v1382
        %1639 = vst [vmem:[%s135 + $0x6e8] sm:$0xff] %v1383
        %1640 = vst [vmem:[%s135 + $0x6f0] sm:$0xff] %v1384
        %1641 = vst [vmem:[%s135 + $0x6f8] sm:$0xff] %v1385
        %1642 = vst [vmem:[%s135 + $0x700] sm:$0xff] %v1386
        %1643 = vst [vmem:[%s135 + $0x708] sm:$0xff] %v1387
        %1644 = vst [vmem:[%s135 + $0x710] sm:$0xff] %v1388
        %1645 = vst [vmem:[%s135 + $0x718] sm:$0xff] %v1389
        %1646 = vst [vmem:[%s135 + $0x720] sm:$0xff] %v1390
        %1647 = vst [vmem:[%s135 + $0x728] sm:$0xff] %v1391
        %1648 = vst [vmem:[%s135 + $0x730] sm:$0xff] %v1392
        %1649 = vst [vmem:[%s135 + $0x738] sm:$0xff] %v1393
        %1650 = vst [vmem:[%s135 + $0x740] sm:$0xff] %v1394
        %1651 = vst [vmem:[%s135 + $0x748] sm:$0xff] %v1395
        %1652 = vst [vmem:[%s135 + $0x750] sm:$0xff] %v1396
        %1653 = vst [vmem:[%s135 + $0x758] sm:$0xff] %v1397
        %1654 = vst [vmem:[%s135 + $0x760] sm:$0xff] %v1398
        %1655 = vst [vmem:[%s135 + $0x768] sm:$0xff] %v1399
        %1656 = vst [vmem:[%s135 + $0x770] sm:$0xff] %v1400
        %1657 = vst [vmem:[%s135 + $0x778] sm:$0xff] %v1401
        %1658 = vst [vmem:[%s135 + $0x780] sm:$0xff] %v1402
        %1659 = vst [vmem:[%s135 + $0x788] sm:$0xff] %v1403
        %1660 = vst [vmem:[%s135 + $0x790] sm:$0xff] %v1404
        %1661 = vst [vmem:[%s135 + $0x798] sm:$0xff] %v1405
        %1662 = vst [vmem:[%s135 + $0x7a0] sm:$0xff] %v1406
        %1663 = vst [vmem:[%s135 + $0x7a8] sm:$0xff] %v1407
        %1664 = vst [vmem:[%s135 + $0x7b0] sm:$0xff] %v1408
        %1665 = vst [vmem:[%s135 + $0x7b8] sm:$0xff] %v1409
        %1666 = vst [vmem:[%s135 + $0x7c0] sm:$0xff] %v1410
        %1667 = vst [vmem:[%s135 + $0x7c8] sm:$0xff] %v1411
        %1668 = vst [vmem:[%s135 + $0x7d0] sm:$0xff] %v1412
        %1669 = vst [vmem:[%s135 + $0x7d8] sm:$0xff] %v1413
        %1670 = vst [vmem:[%s135 + $0x7e0] sm:$0xff] %v1414
        %1671 = vst [vmem:[%s135 + $0x7e8] sm:$0xff] %v1415
        %1672 = vst [vmem:[%s135 + $0x7f0] sm:$0xff] %v1416
        %1673 = vst [vmem:[%s135 + $0x7f8] sm:$0xff] %v1417
        %s1674 = sand.u32 %s52, 1
        %s1675 = scalar_lea.sflag [#allocation4], %s1674
        %s1676 = sand.u32 %s52, 1
        %s1677 = smul.addr %s1676, 2048
        %s1678 = scalar_lea.vmem [#allocation5], %s1677
        // Predicated region
        $region29: #{tpu_custom_call.1} parent=23 // pred_check
          %p1679 = pneg %p62
        $region30: #{tpu_custom_call.1} parent=23 // pred_check_branch
          %1681 = sbr.rel (%p1679) target = $region32
        $region31: #{tpu_custom_call.1} parent=23 // pred_region
          %s1682 = smul.u32 64, %s18
          %s1684 = ssub.s32 32768, 32768
          %1685 = vsyncadd %s1675, %s1684
          %s1686 = smul.addr %s1682, 4
          %s1687 = smul.addr %s1686, 128
          %s1688 = scalar_lea.hbm %s1, %s1687
          %s1689 = sshll.u32 %s1678, 4
          %s1690 = int_to_ptr.vmem [resolvable:$true] %s1689
          %1695 = dma.vmem_to_hbm [thread:$0]  %s1690, 32768, %s1688, %s1675, 512, 512, 32
        $region32: #{tpu_custom_call.1} parent=23 // pred_fallthru
          _
      $region24: #{tpu_custom_call.1} parent=5 // pred_fallthru
        _
      %p1696 = scmp.le.s32.totalorder 2, %s13
      // Predicated region
      $region33: #{tpu_custom_call.1} parent=5 // pred_check
        %p1697 = pneg %p1696
      $region34: #{tpu_custom_call.1} parent=5 // pred_check_branch
        %1699 = sbr.rel (%p1697) target = $region36
      $region35: #{tpu_custom_call.1} parent=5 // pred_region
        %s1700 = ssub.s32 %s13, 2
        // Predicated region
        $region37: #{tpu_custom_call.1} parent=35 // pred_check
          %p1701 = pneg %p68
        $region38: #{tpu_custom_call.1} parent=35 // pred_check_branch
          %1703 = sbr.rel (%p1701) target = $region40
        $region39: #{tpu_custom_call.1} parent=35 // pred_region
          %s1704 = sand.u32 %s53, 1
          %s1705 = scalar_lea.sflag [#allocation4], %s1704
          %s1706 = sand.u32 %s53, 1
          %s1707 = smul.addr %s1706, 2048
          %s1708 = scalar_lea.vmem [#allocation5], %s1707
          %1709 = dma.done %s1705, 32768
        $region40: #{tpu_custom_call.1} parent=35 // pred_fallthru
          _
      $region36: #{tpu_custom_call.1} parent=5 // pred_fallthru
        _
    $region6: #{tpu_custom_call.1} parent=1 // loop_footer
      %s17 = sadd.s32 1, %s13
    $region7: #{tpu_custom_call.1} parent=1 // loop_footer_branch
      %12 = sbr.rel target = $region3
    $region8: #{tpu_custom_call.1} parent=1 // loop_exit
      _
    %1710 = vsyncpa [#allocation3], 1
    %s1711 = scalar_lea.sflag [#allocation3], 1
    %1712 = vsyncpa %s1711, 1
    %1713 = vsyncpa [#allocation4], 1
    %s1714 = scalar_lea.sflag [#allocation4], 1
    %1715 = vsyncpa %s1714, 1

</llo_original>
